<compile_context>
chip_gen: v7x
topology: tpu7x:2x2x1
jax: 0.10.0
libtpu: 0.0.40
codegen_flags: <defaults>
</compile_context>

<pallas_src>
import functools

import numpy as np

import jax
import jax.numpy as jnp
from jax.experimental import pallas as pl
from jax.experimental.pallas import tpu as pltpu


# Tap order shared by the kernel, the mask table and the weight packing.
_TAPS = tuple((di, dj) for di in (-1, 0, 1) for dj in (-1, 0, 1))


# ------------------------------ Pallas kernel ------------------------------ #

def _upsample_kernel(up_ref, sc_ref, w1a_ref, w1b_ref, b1_ref,
                     w3p_ref, b3_ref, wdp_ref, bdp_ref, masks_ref,
                     o_ref, *, H, W):
    """Fused concat + conv1x1 + relu + conv3x3(p=1) + relu + deconv4x4(s=2,p=1).

    Feature-major layout throughout: channels on sublanes, flattened H*W on
    lanes, so every matmul and every store is lane-dense.
    """
    HW = H * W
    cdt = w3p_ref.dtype                      # MXU operand dtype (f32 or bf16)

    def conv_taps(h_f32, w_ref, out_rows):
        """acc = sum_t  W[t] @ tap_t(h);  tap_t = zero-padded shift by (di,dj).

        Taps are lane-rolls (XLU) of the flattened activation, masked by
        precomputed border masks; no scratch buffers, no im2col stack.
        """
        acc = jnp.zeros((out_rows, HW), jnp.float32)
        for t, (di, dj) in enumerate(_TAPS):
            shift = (-(di * W + dj)) % HW
            tap = h_f32 if shift == 0 else pltpu.roll(h_f32, shift=shift, axis=1)
            if (di, dj) != (0, 0):
                tap = tap * masks_ref[t]     # zero wrapped / out-of-image taps
            acc += jnp.dot(w_ref[t], tap.astype(cdt),
                           preferred_element_type=jnp.float32)
        return acc

    # ---- stage 1: concat (via split 1x1 weight) + 1x1 conv + ReLU --------- #
    h1 = jnp.dot(w1a_ref[...], up_ref[0].astype(cdt),
                 preferred_element_type=jnp.float32)
    h1 += jnp.dot(w1b_ref[...], sc_ref[0].astype(cdt),
                  preferred_element_type=jnp.float32)
    h1 = jnp.maximum(h1 + b1_ref[...], 0.0)                      # (Ci, H*W) f32

    # ---- stage 2: 3x3 conv, pad=1, ReLU (9 accumulated taps) -------------- #
    h2 = jnp.maximum(conv_taps(h1, w3p_ref, b3_ref.shape[0]) + b3_ref[...],
                     0.0)                                        # (Co, H*W) f32

    # ---- stage 3: ConvTranspose2d(k=4, s=2, p=1) -------------------------- #
    # Same 9 taps of h2, each multiplied by a (4*Co, Co) weight block packed
    # over the four output phases (2r+s); all phases land in one accumulator.
    y = conv_taps(h2, wdp_ref, bdp_ref.shape[0]) + bdp_ref[...]  # (4*Co, H*W)
    o_ref[0] = y.astype(o_ref.dtype)


# --------------------------------- wrapper --------------------------------- #

def _tap_masks(H, W):
    """(9, 1, H*W) float32 validity masks for taps (di, dj) in (-1,0,1)^2."""
    i, j = np.meshgrid(np.arange(H), np.arange(W), indexing="ij")
    masks = []
    for di, dj in _TAPS:
        valid = ((i + di >= 0) & (i + di < H) &
                 (j + dj >= 0) & (j + dj < W))
        masks.append(valid.reshape(1, H * W))
    return jnp.asarray(np.stack(masks, axis=0), dtype=jnp.float32)


@functools.partial(jax.jit, static_argnames=("compute_dtype",))
def upsample_forward(upsampled, shortcut, kp, compute_dtype=jnp.float32):
    """Forward pass; inputs/outputs in NCHW (PyTorch convention)."""
    N, Ce, H, W = upsampled.shape
    Ci = kp["w1a"].shape[0]
    Co = kp["w3p"].shape[1]
    HW = H * W

    # NCHW -> (N, C, H*W) is a free reshape: no transpose, no concat (the 1x1
    # weight is split into `upsampled` / `shortcut` halves instead).
    up = upsampled.reshape(N, Ce, HW)
    sc = shortcut.reshape(N, Ce, HW)
    masks = _tap_masks(H, W)

    # Only the (whole-array) weight blocks switch dtype for the MXU;
    # activations stay f32 at the pallas boundary and are cast in-register.
    w1a = kp["w1a"].astype(compute_dtype)
    w1b = kp["w1b"].astype(compute_dtype)
    w3p = kp["w3p"].astype(compute_dtype)
    wdp = kp["wdp"].astype(compute_dtype)

    o = pl.pallas_call(
        functools.partial(_upsample_kernel, H=H, W=W),
        out_shape=jax.ShapeDtypeStruct((N, 4 * Co, HW), jnp.float32),
        grid=(N,),
        in_specs=[
            pl.BlockSpec((1, Ce, HW), lambda n: (n, 0, 0)),
            pl.BlockSpec((1, Ce, HW), lambda n: (n, 0, 0)),
            pl.BlockSpec((Ci, Ce), lambda n: (0, 0)),
            pl.BlockSpec((Ci, Ce), lambda n: (0, 0)),
            pl.BlockSpec((Ci, 1), lambda n: (0, 0)),
            pl.BlockSpec((9, Co, Ci), lambda n: (0, 0, 0)),
            pl.BlockSpec((Co, 1), lambda n: (0, 0)),
            pl.BlockSpec((9, 4 * Co, Co), lambda n: (0, 0, 0)),
            pl.BlockSpec((4 * Co, 1), lambda n: (0, 0)),
            pl.BlockSpec((9, 1, HW), lambda n: (0, 0, 0)),
        ],
        out_specs=pl.BlockSpec((1, 4 * Co, HW), lambda n: (n, 0, 0)),
        compiler_params=pltpu.CompilerParams(
            dimension_semantics=("parallel",),   # >=2 units keep both v7x TCs busy
            vmem_limit_bytes=32 * 1024 * 1024,
        ),
    )(up, sc, w1a, w1b, kp["b1"], w3p, kp["b3"], wdp, kp["bdp"], masks)

    # phase-major (N, 2r+s, Co, H*W) -> NCHW (N, Co, 2H, 2W).
    # NOTE(perf): at production sizes the downstream consumer could take the
    # phase-major layout directly and skip this transpose entirely.
    o = o.reshape(N, 2, 2, Co, H, W)
    return jnp.transpose(o, (0, 3, 4, 1, 5, 2)).reshape(N, Co, 2 * H, 2 * W)


# ----------------------------- parameter handling -------------------------- #

def init_params(key, in_channels, out_channels):
    """Deterministic synthetic parameters, stored in PyTorch layouts."""
    ks = jax.random.split(key, 6)
    return {
        # Conv2d(in, in, 1): (O, I, 1, 1)
        "w1": 0.1 * jax.random.normal(ks[0], (in_channels, in_channels, 1, 1), jnp.float32),
        "b1": 0.05 * jax.random.normal(ks[1], (in_channels,), jnp.float32),
        # Conv2d(in, out, 3): (O, I, 3, 3)
        "w3": 0.1 * jax.random.normal(ks[2], (out_channels, in_channels, 3, 3), jnp.float32),
        "b3": 0.05 * jax.random.normal(ks[3], (out_channels,), jnp.float32),
        # ConvTranspose2d(out, out, 4): (I, O, 4, 4)
        "wd": 0.1 * jax.random.normal(ks[4], (out_channels, out_channels, 4, 4), jnp.float32),
        "bd": 0.05 * jax.random.normal(ks[5], (out_channels,), jnp.float32),
    }


def kernel_params(p):
    """Convert PyTorch-layout weights to the per-tap packed kernel layouts."""
    Ci = p["w1"].shape[0]
    Ce = Ci // 2
    Co = p["w3"].shape[0]

    w1m = p["w1"][:, :, 0, 0]                                   # (Ci, Ci)

    # (Co, Ci, 3, 3) -> (9, Co, Ci); tap t=(di+1)*3+(dj+1) <-> w3[:, :, di+1, dj+1]
    w3p = jnp.transpose(p["w3"], (2, 3, 0, 1)).reshape(9, Co, Ci)

    # ConvTranspose2d(k=4, s=2, p=1): for output phase (r, s) in {0,1}^2,
    #   out[co, 2a+r, 2b+s] = bd[co] + sum_{di,dj,ci} h2[ci, a+di, b+dj]
    #                                  * wd[ci, co, 1-2*di+r, 1-2*dj+s]
    # restricted to taps with (di-r+1, dj-s+1) in {0,1}^2.  Pack, per tap, a
    # (4*Co, Co) block covering all four phases (zeros where the tap is unused).
    wd = p["wd"]                                                # (Ci=Co, Co, 4, 4)
    tap_blocks = []
    for di, dj in _TAPS:
        phase_rows = []
        for r in range(2):
            for s in range(2):
                dh, dw = di - r + 1, dj - s + 1
                if 0 <= dh <= 1 and 0 <= dw <= 1:
                    phase_rows.append(wd[:, :, 3 - 2 * dh - r, 3 - 2 * dw - s].T)
                else:
                    phase_rows.append(jnp.zeros((Co, Co), jnp.float32))
        tap_blocks.append(jnp.concatenate(phase_rows, axis=0))  # (4*Co, Co)
    wdp = jnp.stack(tap_blocks, axis=0)                         # (9, 4*Co, Co)

    return {
        "w1a": w1m[:, :Ce],                 # 1x1 weight half for `upsampled`
        "w1b": w1m[:, Ce:],                 # 1x1 weight half for `shortcut`
        "b1": p["b1"].reshape(Ci, 1),
        "w3p": w3p,
        "b3": p["b3"].reshape(Co, 1),
        "wdp": wdp,
        "bdp": jnp.tile(p["bd"], 4).reshape(4 * Co, 1),
    }


# ----------------------------- pure-JAX reference --------------------------- #

def reference_forward(upsampled, shortcut, p):
    dn = ("NCHW", "OIHW", "NCHW")
    x = jnp.concatenate([upsampled, shortcut], axis=1)
    x = jax.lax.conv_general_dilated(x, p["w1"], (1, 1), "VALID", dimension_numbers=dn)
    x = jax.nn.relu(x + p["b1"][None, :, None, None])
    x = jax.lax.conv_general_dilated(x, p["w3"], (1, 1), ((1, 1), (1, 1)), dimension_numbers=dn)
    x = jax.nn.relu(x + p["b3"][None, :, None, None])
    wd_conv = jnp.transpose(p["wd"][:, :, ::-1, ::-1], (1, 0, 2, 3))
    x = jax.lax.conv_general_dilated(x, wd_conv, (1, 1), ((2, 2), (2, 2)),
                                     lhs_dilation=(2, 2), dimension_numbers=dn)
    return x + p["bd"][None, :, None, None]


# ----------------------------------- main ----------------------------------- #

if __name__ == "__main__":
    key = jax.random.PRNGKey(0)
    k_up, k_sc, k_par = jax.random.split(key, 3)

    N, C_each, H, W = 2, 4, 16, 16
    in_channels = 2 * C_each          # channels after concat
    out_channels = 8

    upsampled = jax.random.normal(k_up, (N, C_each, H, W), jnp.float32)
    shortcut = jax.random.normal(k_sc, (N, C_each, H, W), jnp.float32)

    torch_params = init_params(k_par, in_channels, out_channels)
    kp = kernel_params(torch_params)
    ref = jax.block_until_ready(reference_forward(upsampled, shortcut, torch_params))

    # f32 MXU operands: tight tolerance guards the tap/weight packing.
    out_f32 = jax.block_until_ready(
        upsample_forward(upsampled, shortcut, kp, compute_dtype=jnp.float32))
    assert out_f32.shape == (N, out_channels, 2 * H, 2 * W), out_f32.shape
    err_f32 = float(jnp.max(jnp.abs(out_f32 - ref)))
    assert err_f32 < 1e-4, f"f32 mismatch vs reference, max abs err = {err_f32}"

    # bf16 MXU operands with f32 accumulation: the fast path on v5e/v6e/v7x.
    out_bf16 = jax.block_until_ready(
        upsample_forward(upsampled, shortcut, kp, compute_dtype=jnp.bfloat16))
    err_bf16 = float(jnp.max(jnp.abs(out_bf16 - ref)))
    assert err_bf16 < 5e-2, f"bf16 mismatch vs reference, max abs err = {err_bf16}"

    print("KERNEL_OK")
</pallas_src>

<mosaic_0001>
module attributes {stable_mosaic.version = 11 : i64} {
  func.func @_upsample_kernel(%arg0: i32, %arg1: memref<1x4x256xf32, #tpu.memory_space<vmem>>, %arg2: memref<1x4x256xf32, #tpu.memory_space<vmem>>, %arg3: memref<8x4xf32, #tpu.memory_space<vmem>>, %arg4: memref<8x4xf32, #tpu.memory_space<vmem>>, %arg5: memref<8x1xf32, #tpu.memory_space<vmem>>, %arg6: memref<9x8x8xf32, #tpu.memory_space<vmem>>, %arg7: memref<8x1xf32, #tpu.memory_space<vmem>>, %arg8: memref<9x32x8xf32, #tpu.memory_space<vmem>>, %arg9: memref<32x1xf32, #tpu.memory_space<vmem>>, %arg10: memref<9x1x256xf32, #tpu.memory_space<vmem>>, %arg11: memref<1x32x256xf32, #tpu.memory_space<vmem>>) attributes {dimension_semantics = [#tpu.dimension_semantics<parallel>], iteration_bounds = array<i64: 2>, scalar_prefetch = 0 : i64, scratch_operands = 0 : i64, tpu.core_type = #tpu.core_type<tc>, window_params = [{transform_indices = @transform_0, window_bounds = array<i64: 1, 4, 256>}, {transform_indices = @transform_1, window_bounds = array<i64: 1, 4, 256>}, {pipeline_mode = #tpu.pipeline_mode<synchronous>, transform_indices = @transform_2, window_bounds = array<i64: 8, 4>}, {pipeline_mode = #tpu.pipeline_mode<synchronous>, transform_indices = @transform_3, window_bounds = array<i64: 8, 4>}, {pipeline_mode = #tpu.pipeline_mode<synchronous>, transform_indices = @transform_4, window_bounds = array<i64: 8, 1>}, {pipeline_mode = #tpu.pipeline_mode<synchronous>, transform_indices = @transform_5, window_bounds = array<i64: 9, 8, 8>}, {pipeline_mode = #tpu.pipeline_mode<synchronous>, transform_indices = @transform_6, window_bounds = array<i64: 8, 1>}, {pipeline_mode = #tpu.pipeline_mode<synchronous>, transform_indices = @transform_7, window_bounds = array<i64: 9, 32, 8>}, {pipeline_mode = #tpu.pipeline_mode<synchronous>, transform_indices = @transform_8, window_bounds = array<i64: 32, 1>}, {pipeline_mode = #tpu.pipeline_mode<synchronous>, transform_indices = @transform_9, window_bounds = array<i64: 9, 1, 256>}, {transform_indices = @transform_10, window_bounds = array<i64: 1, 32, 256>}]} {
    %c0 = arith.constant 0 : index
    %c0_0 = arith.constant 0 : index
    %0 = vector.load %arg3[%c0, %c0_0] : memref<8x4xf32, #tpu.memory_space<vmem>>, vector<8x4xf32>
    %c0_1 = arith.constant 0 : index
    %c0_2 = arith.constant 0 : index
    %c0_3 = arith.constant 0 : index
    %1 = vector.load %arg1[%c0_1, %c0_2, %c0_3] : memref<1x4x256xf32, #tpu.memory_space<vmem>>, vector<1x4x256xf32>
    %2 = vector.shape_cast %1 : vector<1x4x256xf32> to vector<4x256xf32>
    %cst = arith.constant dense<0.000000e+00> : vector<8x256xf32>
    %3 = tpu.matmul %0, %2, %cst {dimension_numbers = #tpu.dot_dimension_numbers<[1], [0], [0], [1], [0, 0, 1, 1], [], []>} : vector<8x4xf32>, vector<4x256xf32>, vector<8x256xf32> -> vector<8x256xf32>
    %c0_4 = arith.constant 0 : index
    %c0_5 = arith.constant 0 : index
    %4 = vector.load %arg4[%c0_4, %c0_5] : memref<8x4xf32, #tpu.memory_space<vmem>>, vector<8x4xf32>
    %c0_6 = arith.constant 0 : index
    %c0_7 = arith.constant 0 : index
    %c0_8 = arith.constant 0 : index
    %5 = vector.load %arg2[%c0_6, %c0_7, %c0_8] : memref<1x4x256xf32, #tpu.memory_space<vmem>>, vector<1x4x256xf32>
    %6 = vector.shape_cast %5 : vector<1x4x256xf32> to vector<4x256xf32>
    %cst_9 = arith.constant dense<0.000000e+00> : vector<8x256xf32>
    %7 = tpu.matmul %4, %6, %cst_9 {dimension_numbers = #tpu.dot_dimension_numbers<[1], [0], [0], [1], [0, 0, 1, 1], [], []>} : vector<8x4xf32>, vector<4x256xf32>, vector<8x256xf32> -> vector<8x256xf32>
    %8 = arith.addf %3, %7 : vector<8x256xf32>
    %c0_10 = arith.constant 0 : index
    %c0_11 = arith.constant 0 : index
    %9 = vector.load %arg5[%c0_10, %c0_11] : memref<8x1xf32, #tpu.memory_space<vmem>>, vector<8x1xf32>
    %10 = vector.broadcast %9 : vector<8x1xf32> to vector<8x256xf32>
    %11 = arith.addf %8, %10 : vector<8x256xf32>
    %cst_12 = arith.constant 0.000000e+00 : f32
    %12 = vector.broadcast %cst_12 : f32 to vector<8x256xf32>
    %13 = arith.maximumf %11, %12 : vector<8x256xf32>
    %cst_13 = arith.constant 0.000000e+00 : f32
    %14 = vector.broadcast %cst_13 : f32 to vector<8x256xf32>
    %c17_i32 = arith.constant 17 : i32
    %15 = tpu.dynamic_rotate %13 by %c17_i32 dim 1 : vector<8x256xf32>, i32 -> vector<8x256xf32>
    %c0_14 = arith.constant 0 : index
    %c0_15 = arith.constant 0 : index
    %c0_16 = arith.constant 0 : index
    %16 = vector.load %arg10[%c0_14, %c0_15, %c0_16] : memref<9x1x256xf32, #tpu.memory_space<vmem>>, vector<1x1x256xf32>
    %17 = vector.shape_cast %16 : vector<1x1x256xf32> to vector<1x256xf32>
    %18 = vector.broadcast %17 : vector<1x256xf32> to vector<8x256xf32>
    %19 = arith.mulf %15, %18 : vector<8x256xf32>
    %c0_17 = arith.constant 0 : index
    %c0_18 = arith.constant 0 : index
    %c0_19 = arith.constant 0 : index
    %20 = vector.load %arg6[%c0_17, %c0_18, %c0_19] : memref<9x8x8xf32, #tpu.memory_space<vmem>>, vector<1x8x8xf32>
    %21 = vector.shape_cast %20 : vector<1x8x8xf32> to vector<8x8xf32>
    %cst_20 = arith.constant dense<0.000000e+00> : vector<8x256xf32>
    %22 = tpu.matmul %21, %19, %cst_20 {dimension_numbers = #tpu.dot_dimension_numbers<[1], [0], [0], [1], [0, 0, 1, 1], [], []>} : vector<8x8xf32>, vector<8x256xf32>, vector<8x256xf32> -> vector<8x256xf32>
    %23 = arith.addf %14, %22 : vector<8x256xf32>
    %c16_i32 = arith.constant 16 : i32
    %24 = tpu.dynamic_rotate %13 by %c16_i32 dim 1 : vector<8x256xf32>, i32 -> vector<8x256xf32>
    %c1 = arith.constant 1 : index
    %c0_21 = arith.constant 0 : index
    %c0_22 = arith.constant 0 : index
    %25 = vector.load %arg10[%c1, %c0_21, %c0_22] : memref<9x1x256xf32, #tpu.memory_space<vmem>>, vector<1x1x256xf32>
    %26 = vector.shape_cast %25 : vector<1x1x256xf32> to vector<1x256xf32>
    %27 = vector.broadcast %26 : vector<1x256xf32> to vector<8x256xf32>
    %28 = arith.mulf %24, %27 : vector<8x256xf32>
    %c1_23 = arith.constant 1 : index
    %c0_24 = arith.constant 0 : index
    %c0_25 = arith.constant 0 : index
    %29 = vector.load %arg6[%c1_23, %c0_24, %c0_25] : memref<9x8x8xf32, #tpu.memory_space<vmem>>, vector<1x8x8xf32>
    %30 = vector.shape_cast %29 : vector<1x8x8xf32> to vector<8x8xf32>
    %cst_26 = arith.constant dense<0.000000e+00> : vector<8x256xf32>
    %31 = tpu.matmul %30, %28, %cst_26 {dimension_numbers = #tpu.dot_dimension_numbers<[1], [0], [0], [1], [0, 0, 1, 1], [], []>} : vector<8x8xf32>, vector<8x256xf32>, vector<8x256xf32> -> vector<8x256xf32>
    %32 = arith.addf %23, %31 : vector<8x256xf32>
    %c15_i32 = arith.constant 15 : i32
    %33 = tpu.dynamic_rotate %13 by %c15_i32 dim 1 : vector<8x256xf32>, i32 -> vector<8x256xf32>
    %c2 = arith.constant 2 : index
    %c0_27 = arith.constant 0 : index
    %c0_28 = arith.constant 0 : index
    %34 = vector.load %arg10[%c2, %c0_27, %c0_28] : memref<9x1x256xf32, #tpu.memory_space<vmem>>, vector<1x1x256xf32>
    %35 = vector.shape_cast %34 : vector<1x1x256xf32> to vector<1x256xf32>
    %36 = vector.broadcast %35 : vector<1x256xf32> to vector<8x256xf32>
    %37 = arith.mulf %33, %36 : vector<8x256xf32>
    %c2_29 = arith.constant 2 : index
    %c0_30 = arith.constant 0 : index
    %c0_31 = arith.constant 0 : index
    %38 = vector.load %arg6[%c2_29, %c0_30, %c0_31] : memref<9x8x8xf32, #tpu.memory_space<vmem>>, vector<1x8x8xf32>
    %39 = vector.shape_cast %38 : vector<1x8x8xf32> to vector<8x8xf32>
    %cst_32 = arith.constant dense<0.000000e+00> : vector<8x256xf32>
    %40 = tpu.matmul %39, %37, %cst_32 {dimension_numbers = #tpu.dot_dimension_numbers<[1], [0], [0], [1], [0, 0, 1, 1], [], []>} : vector<8x8xf32>, vector<8x256xf32>, vector<8x256xf32> -> vector<8x256xf32>
    %41 = arith.addf %32, %40 : vector<8x256xf32>
    %c1_i32 = arith.constant 1 : i32
    %42 = tpu.dynamic_rotate %13 by %c1_i32 dim 1 : vector<8x256xf32>, i32 -> vector<8x256xf32>
    %c3 = arith.constant 3 : index
    %c0_33 = arith.constant 0 : index
    %c0_34 = arith.constant 0 : index
    %43 = vector.load %arg10[%c3, %c0_33, %c0_34] : memref<9x1x256xf32, #tpu.memory_space<vmem>>, vector<1x1x256xf32>
    %44 = vector.shape_cast %43 : vector<1x1x256xf32> to vector<1x256xf32>
    %45 = vector.broadcast %44 : vector<1x256xf32> to vector<8x256xf32>
    %46 = arith.mulf %42, %45 : vector<8x256xf32>
    %c3_35 = arith.constant 3 : index
    %c0_36 = arith.constant 0 : index
    %c0_37 = arith.constant 0 : index
    %47 = vector.load %arg6[%c3_35, %c0_36, %c0_37] : memref<9x8x8xf32, #tpu.memory_space<vmem>>, vector<1x8x8xf32>
    %48 = vector.shape_cast %47 : vector<1x8x8xf32> to vector<8x8xf32>
    %cst_38 = arith.constant dense<0.000000e+00> : vector<8x256xf32>
    %49 = tpu.matmul %48, %46, %cst_38 {dimension_numbers = #tpu.dot_dimension_numbers<[1], [0], [0], [1], [0, 0, 1, 1], [], []>} : vector<8x8xf32>, vector<8x256xf32>, vector<8x256xf32> -> vector<8x256xf32>
    %50 = arith.addf %41, %49 : vector<8x256xf32>
    %c4 = arith.constant 4 : index
    %c0_39 = arith.constant 0 : index
    %c0_40 = arith.constant 0 : index
    %51 = vector.load %arg6[%c4, %c0_39, %c0_40] : memref<9x8x8xf32, #tpu.memory_space<vmem>>, vector<1x8x8xf32>
    %52 = vector.shape_cast %51 : vector<1x8x8xf32> to vector<8x8xf32>
    %cst_41 = arith.constant dense<0.000000e+00> : vector<8x256xf32>
    %53 = tpu.matmul %52, %13, %cst_41 {dimension_numbers = #tpu.dot_dimension_numbers<[1], [0], [0], [1], [0, 0, 1, 1], [], []>} : vector<8x8xf32>, vector<8x256xf32>, vector<8x256xf32> -> vector<8x256xf32>
    %54 = arith.addf %50, %53 : vector<8x256xf32>
    %c255_i32 = arith.constant 255 : i32
    %55 = tpu.dynamic_rotate %13 by %c255_i32 dim 1 : vector<8x256xf32>, i32 -> vector<8x256xf32>
    %c5 = arith.constant 5 : index
    %c0_42 = arith.constant 0 : index
    %c0_43 = arith.constant 0 : index
    %56 = vector.load %arg10[%c5, %c0_42, %c0_43] : memref<9x1x256xf32, #tpu.memory_space<vmem>>, vector<1x1x256xf32>
    %57 = vector.shape_cast %56 : vector<1x1x256xf32> to vector<1x256xf32>
    %58 = vector.broadcast %57 : vector<1x256xf32> to vector<8x256xf32>
    %59 = arith.mulf %55, %58 : vector<8x256xf32>
    %c5_44 = arith.constant 5 : index
    %c0_45 = arith.constant 0 : index
    %c0_46 = arith.constant 0 : index
    %60 = vector.load %arg6[%c5_44, %c0_45, %c0_46] : memref<9x8x8xf32, #tpu.memory_space<vmem>>, vector<1x8x8xf32>
    %61 = vector.shape_cast %60 : vector<1x8x8xf32> to vector<8x8xf32>
    %cst_47 = arith.constant dense<0.000000e+00> : vector<8x256xf32>
    %62 = tpu.matmul %61, %59, %cst_47 {dimension_numbers = #tpu.dot_dimension_numbers<[1], [0], [0], [1], [0, 0, 1, 1], [], []>} : vector<8x8xf32>, vector<8x256xf32>, vector<8x256xf32> -> vector<8x256xf32>
    %63 = arith.addf %54, %62 : vector<8x256xf32>
    %c241_i32 = arith.constant 241 : i32
    %64 = tpu.dynamic_rotate %13 by %c241_i32 dim 1 : vector<8x256xf32>, i32 -> vector<8x256xf32>
    %c6 = arith.constant 6 : index
    %c0_48 = arith.constant 0 : index
    %c0_49 = arith.constant 0 : index
    %65 = vector.load %arg10[%c6, %c0_48, %c0_49] : memref<9x1x256xf32, #tpu.memory_space<vmem>>, vector<1x1x256xf32>
    %66 = vector.shape_cast %65 : vector<1x1x256xf32> to vector<1x256xf32>
    %67 = vector.broadcast %66 : vector<1x256xf32> to vector<8x256xf32>
    %68 = arith.mulf %64, %67 : vector<8x256xf32>
    %c6_50 = arith.constant 6 : index
    %c0_51 = arith.constant 0 : index
    %c0_52 = arith.constant 0 : index
    %69 = vector.load %arg6[%c6_50, %c0_51, %c0_52] : memref<9x8x8xf32, #tpu.memory_space<vmem>>, vector<1x8x8xf32>
    %70 = vector.shape_cast %69 : vector<1x8x8xf32> to vector<8x8xf32>
    %cst_53 = arith.constant dense<0.000000e+00> : vector<8x256xf32>
    %71 = tpu.matmul %70, %68, %cst_53 {dimension_numbers = #tpu.dot_dimension_numbers<[1], [0], [0], [1], [0, 0, 1, 1], [], []>} : vector<8x8xf32>, vector<8x256xf32>, vector<8x256xf32> -> vector<8x256xf32>
    %72 = arith.addf %63, %71 : vector<8x256xf32>
    %c240_i32 = arith.constant 240 : i32
    %73 = tpu.dynamic_rotate %13 by %c240_i32 dim 1 : vector<8x256xf32>, i32 -> vector<8x256xf32>
    %c7 = arith.constant 7 : index
    %c0_54 = arith.constant 0 : index
    %c0_55 = arith.constant 0 : index
    %74 = vector.load %arg10[%c7, %c0_54, %c0_55] : memref<9x1x256xf32, #tpu.memory_space<vmem>>, vector<1x1x256xf32>
    %75 = vector.shape_cast %74 : vector<1x1x256xf32> to vector<1x256xf32>
    %76 = vector.broadcast %75 : vector<1x256xf32> to vector<8x256xf32>
    %77 = arith.mulf %73, %76 : vector<8x256xf32>
    %c7_56 = arith.constant 7 : index
    %c0_57 = arith.constant 0 : index
    %c0_58 = arith.constant 0 : index
    %78 = vector.load %arg6[%c7_56, %c0_57, %c0_58] : memref<9x8x8xf32, #tpu.memory_space<vmem>>, vector<1x8x8xf32>
    %79 = vector.shape_cast %78 : vector<1x8x8xf32> to vector<8x8xf32>
    %cst_59 = arith.constant dense<0.000000e+00> : vector<8x256xf32>
    %80 = tpu.matmul %79, %77, %cst_59 {dimension_numbers = #tpu.dot_dimension_numbers<[1], [0], [0], [1], [0, 0, 1, 1], [], []>} : vector<8x8xf32>, vector<8x256xf32>, vector<8x256xf32> -> vector<8x256xf32>
    %81 = arith.addf %72, %80 : vector<8x256xf32>
    %c239_i32 = arith.constant 239 : i32
    %82 = tpu.dynamic_rotate %13 by %c239_i32 dim 1 : vector<8x256xf32>, i32 -> vector<8x256xf32>
    %c8 = arith.constant 8 : index
    %c0_60 = arith.constant 0 : index
    %c0_61 = arith.constant 0 : index
    %83 = vector.load %arg10[%c8, %c0_60, %c0_61] : memref<9x1x256xf32, #tpu.memory_space<vmem>>, vector<1x1x256xf32>
    %84 = vector.shape_cast %83 : vector<1x1x256xf32> to vector<1x256xf32>
    %85 = vector.broadcast %84 : vector<1x256xf32> to vector<8x256xf32>
    %86 = arith.mulf %82, %85 : vector<8x256xf32>
    %c8_62 = arith.constant 8 : index
    %c0_63 = arith.constant 0 : index
    %c0_64 = arith.constant 0 : index
    %87 = vector.load %arg6[%c8_62, %c0_63, %c0_64] : memref<9x8x8xf32, #tpu.memory_space<vmem>>, vector<1x8x8xf32>
    %88 = vector.shape_cast %87 : vector<1x8x8xf32> to vector<8x8xf32>
    %cst_65 = arith.constant dense<0.000000e+00> : vector<8x256xf32>
    %89 = tpu.matmul %88, %86, %cst_65 {dimension_numbers = #tpu.dot_dimension_numbers<[1], [0], [0], [1], [0, 0, 1, 1], [], []>} : vector<8x8xf32>, vector<8x256xf32>, vector<8x256xf32> -> vector<8x256xf32>
    %90 = arith.addf %81, %89 : vector<8x256xf32>
    %c0_66 = arith.constant 0 : index
    %c0_67 = arith.constant 0 : index
    %91 = vector.load %arg7[%c0_66, %c0_67] : memref<8x1xf32, #tpu.memory_space<vmem>>, vector<8x1xf32>
    %92 = vector.broadcast %91 : vector<8x1xf32> to vector<8x256xf32>
    %93 = arith.addf %90, %92 : vector<8x256xf32>
    %cst_68 = arith.constant 0.000000e+00 : f32
    %94 = vector.broadcast %cst_68 : f32 to vector<8x256xf32>
    %95 = arith.maximumf %93, %94 : vector<8x256xf32>
    %cst_69 = arith.constant 0.000000e+00 : f32
    %96 = vector.broadcast %cst_69 : f32 to vector<32x256xf32>
    %c17_i32_70 = arith.constant 17 : i32
    %97 = tpu.dynamic_rotate %95 by %c17_i32_70 dim 1 : vector<8x256xf32>, i32 -> vector<8x256xf32>
    %c0_71 = arith.constant 0 : index
    %c0_72 = arith.constant 0 : index
    %c0_73 = arith.constant 0 : index
    %98 = vector.load %arg10[%c0_71, %c0_72, %c0_73] : memref<9x1x256xf32, #tpu.memory_space<vmem>>, vector<1x1x256xf32>
    %99 = vector.shape_cast %98 : vector<1x1x256xf32> to vector<1x256xf32>
    %100 = vector.broadcast %99 : vector<1x256xf32> to vector<8x256xf32>
    %101 = arith.mulf %97, %100 : vector<8x256xf32>
    %c0_74 = arith.constant 0 : index
    %c0_75 = arith.constant 0 : index
    %c0_76 = arith.constant 0 : index
    %102 = vector.load %arg8[%c0_74, %c0_75, %c0_76] : memref<9x32x8xf32, #tpu.memory_space<vmem>>, vector<1x32x8xf32>
    %103 = vector.shape_cast %102 : vector<1x32x8xf32> to vector<32x8xf32>
    %cst_77 = arith.constant dense<0.000000e+00> : vector<32x256xf32>
    %104 = tpu.matmul %103, %101, %cst_77 {dimension_numbers = #tpu.dot_dimension_numbers<[1], [0], [0], [1], [0, 0, 1, 1], [], []>} : vector<32x8xf32>, vector<8x256xf32>, vector<32x256xf32> -> vector<32x256xf32>
    %105 = arith.addf %96, %104 : vector<32x256xf32>
    %c16_i32_78 = arith.constant 16 : i32
    %106 = tpu.dynamic_rotate %95 by %c16_i32_78 dim 1 : vector<8x256xf32>, i32 -> vector<8x256xf32>
    %c1_79 = arith.constant 1 : index
    %c0_80 = arith.constant 0 : index
    %c0_81 = arith.constant 0 : index
    %107 = vector.load %arg10[%c1_79, %c0_80, %c0_81] : memref<9x1x256xf32, #tpu.memory_space<vmem>>, vector<1x1x256xf32>
    %108 = vector.shape_cast %107 : vector<1x1x256xf32> to vector<1x256xf32>
    %109 = vector.broadcast %108 : vector<1x256xf32> to vector<8x256xf32>
    %110 = arith.mulf %106, %109 : vector<8x256xf32>
    %c1_82 = arith.constant 1 : index
    %c0_83 = arith.constant 0 : index
    %c0_84 = arith.constant 0 : index
    %111 = vector.load %arg8[%c1_82, %c0_83, %c0_84] : memref<9x32x8xf32, #tpu.memory_space<vmem>>, vector<1x32x8xf32>
    %112 = vector.shape_cast %111 : vector<1x32x8xf32> to vector<32x8xf32>
    %cst_85 = arith.constant dense<0.000000e+00> : vector<32x256xf32>
    %113 = tpu.matmul %112, %110, %cst_85 {dimension_numbers = #tpu.dot_dimension_numbers<[1], [0], [0], [1], [0, 0, 1, 1], [], []>} : vector<32x8xf32>, vector<8x256xf32>, vector<32x256xf32> -> vector<32x256xf32>
    %114 = arith.addf %105, %113 : vector<32x256xf32>
    %c15_i32_86 = arith.constant 15 : i32
    %115 = tpu.dynamic_rotate %95 by %c15_i32_86 dim 1 : vector<8x256xf32>, i32 -> vector<8x256xf32>
    %c2_87 = arith.constant 2 : index
    %c0_88 = arith.constant 0 : index
    %c0_89 = arith.constant 0 : index
    %116 = vector.load %arg10[%c2_87, %c0_88, %c0_89] : memref<9x1x256xf32, #tpu.memory_space<vmem>>, vector<1x1x256xf32>
    %117 = vector.shape_cast %116 : vector<1x1x256xf32> to vector<1x256xf32>
    %118 = vector.broadcast %117 : vector<1x256xf32> to vector<8x256xf32>
    %119 = arith.mulf %115, %118 : vector<8x256xf32>
    %c2_90 = arith.constant 2 : index
    %c0_91 = arith.constant 0 : index
    %c0_92 = arith.constant 0 : index
    %120 = vector.load %arg8[%c2_90, %c0_91, %c0_92] : memref<9x32x8xf32, #tpu.memory_space<vmem>>, vector<1x32x8xf32>
    %121 = vector.shape_cast %120 : vector<1x32x8xf32> to vector<32x8xf32>
    %cst_93 = arith.constant dense<0.000000e+00> : vector<32x256xf32>
    %122 = tpu.matmul %121, %119, %cst_93 {dimension_numbers = #tpu.dot_dimension_numbers<[1], [0], [0], [1], [0, 0, 1, 1], [], []>} : vector<32x8xf32>, vector<8x256xf32>, vector<32x256xf32> -> vector<32x256xf32>
    %123 = arith.addf %114, %122 : vector<32x256xf32>
    %c1_i32_94 = arith.constant 1 : i32
    %124 = tpu.dynamic_rotate %95 by %c1_i32_94 dim 1 : vector<8x256xf32>, i32 -> vector<8x256xf32>
    %c3_95 = arith.constant 3 : index
    %c0_96 = arith.constant 0 : index
    %c0_97 = arith.constant 0 : index
    %125 = vector.load %arg10[%c3_95, %c0_96, %c0_97] : memref<9x1x256xf32, #tpu.memory_space<vmem>>, vector<1x1x256xf32>
    %126 = vector.shape_cast %125 : vector<1x1x256xf32> to vector<1x256xf32>
    %127 = vector.broadcast %126 : vector<1x256xf32> to vector<8x256xf32>
    %128 = arith.mulf %124, %127 : vector<8x256xf32>
    %c3_98 = arith.constant 3 : index
    %c0_99 = arith.constant 0 : index
    %c0_100 = arith.constant 0 : index
    %129 = vector.load %arg8[%c3_98, %c0_99, %c0_100] : memref<9x32x8xf32, #tpu.memory_space<vmem>>, vector<1x32x8xf32>
    %130 = vector.shape_cast %129 : vector<1x32x8xf32> to vector<32x8xf32>
    %cst_101 = arith.constant dense<0.000000e+00> : vector<32x256xf32>
    %131 = tpu.matmul %130, %128, %cst_101 {dimension_numbers = #tpu.dot_dimension_numbers<[1], [0], [0], [1], [0, 0, 1, 1], [], []>} : vector<32x8xf32>, vector<8x256xf32>, vector<32x256xf32> -> vector<32x256xf32>
    %132 = arith.addf %123, %131 : vector<32x256xf32>
    %c4_102 = arith.constant 4 : index
    %c0_103 = arith.constant 0 : index
    %c0_104 = arith.constant 0 : index
    %133 = vector.load %arg8[%c4_102, %c0_103, %c0_104] : memref<9x32x8xf32, #tpu.memory_space<vmem>>, vector<1x32x8xf32>
    %134 = vector.shape_cast %133 : vector<1x32x8xf32> to vector<32x8xf32>
    %cst_105 = arith.constant dense<0.000000e+00> : vector<32x256xf32>
    %135 = tpu.matmul %134, %95, %cst_105 {dimension_numbers = #tpu.dot_dimension_numbers<[1], [0], [0], [1], [0, 0, 1, 1], [], []>} : vector<32x8xf32>, vector<8x256xf32>, vector<32x256xf32> -> vector<32x256xf32>
    %136 = arith.addf %132, %135 : vector<32x256xf32>
    %c255_i32_106 = arith.constant 255 : i32
    %137 = tpu.dynamic_rotate %95 by %c255_i32_106 dim 1 : vector<8x256xf32>, i32 -> vector<8x256xf32>
    %c5_107 = arith.constant 5 : index
    %c0_108 = arith.constant 0 : index
    %c0_109 = arith.constant 0 : index
    %138 = vector.load %arg10[%c5_107, %c0_108, %c0_109] : memref<9x1x256xf32, #tpu.memory_space<vmem>>, vector<1x1x256xf32>
    %139 = vector.shape_cast %138 : vector<1x1x256xf32> to vector<1x256xf32>
    %140 = vector.broadcast %139 : vector<1x256xf32> to vector<8x256xf32>
    %141 = arith.mulf %137, %140 : vector<8x256xf32>
    %c5_110 = arith.constant 5 : index
    %c0_111 = arith.constant 0 : index
    %c0_112 = arith.constant 0 : index
    %142 = vector.load %arg8[%c5_110, %c0_111, %c0_112] : memref<9x32x8xf32, #tpu.memory_space<vmem>>, vector<1x32x8xf32>
    %143 = vector.shape_cast %142 : vector<1x32x8xf32> to vector<32x8xf32>
    %cst_113 = arith.constant dense<0.000000e+00> : vector<32x256xf32>
    %144 = tpu.matmul %143, %141, %cst_113 {dimension_numbers = #tpu.dot_dimension_numbers<[1], [0], [0], [1], [0, 0, 1, 1], [], []>} : vector<32x8xf32>, vector<8x256xf32>, vector<32x256xf32> -> vector<32x256xf32>
    %145 = arith.addf %136, %144 : vector<32x256xf32>
    %c241_i32_114 = arith.constant 241 : i32
    %146 = tpu.dynamic_rotate %95 by %c241_i32_114 dim 1 : vector<8x256xf32>, i32 -> vector<8x256xf32>
    %c6_115 = arith.constant 6 : index
    %c0_116 = arith.constant 0 : index
    %c0_117 = arith.constant 0 : index
    %147 = vector.load %arg10[%c6_115, %c0_116, %c0_117] : memref<9x1x256xf32, #tpu.memory_space<vmem>>, vector<1x1x256xf32>
    %148 = vector.shape_cast %147 : vector<1x1x256xf32> to vector<1x256xf32>
    %149 = vector.broadcast %148 : vector<1x256xf32> to vector<8x256xf32>
    %150 = arith.mulf %146, %149 : vector<8x256xf32>
    %c6_118 = arith.constant 6 : index
    %c0_119 = arith.constant 0 : index
    %c0_120 = arith.constant 0 : index
    %151 = vector.load %arg8[%c6_118, %c0_119, %c0_120] : memref<9x32x8xf32, #tpu.memory_space<vmem>>, vector<1x32x8xf32>
    %152 = vector.shape_cast %151 : vector<1x32x8xf32> to vector<32x8xf32>
    %cst_121 = arith.constant dense<0.000000e+00> : vector<32x256xf32>
    %153 = tpu.matmul %152, %150, %cst_121 {dimension_numbers = #tpu.dot_dimension_numbers<[1], [0], [0], [1], [0, 0, 1, 1], [], []>} : vector<32x8xf32>, vector<8x256xf32>, vector<32x256xf32> -> vector<32x256xf32>
    %154 = arith.addf %145, %153 : vector<32x256xf32>
    %c240_i32_122 = arith.constant 240 : i32
    %155 = tpu.dynamic_rotate %95 by %c240_i32_122 dim 1 : vector<8x256xf32>, i32 -> vector<8x256xf32>
    %c7_123 = arith.constant 7 : index
    %c0_124 = arith.constant 0 : index
    %c0_125 = arith.constant 0 : index
    %156 = vector.load %arg10[%c7_123, %c0_124, %c0_125] : memref<9x1x256xf32, #tpu.memory_space<vmem>>, vector<1x1x256xf32>
    %157 = vector.shape_cast %156 : vector<1x1x256xf32> to vector<1x256xf32>
    %158 = vector.broadcast %157 : vector<1x256xf32> to vector<8x256xf32>
    %159 = arith.mulf %155, %158 : vector<8x256xf32>
    %c7_126 = arith.constant 7 : index
    %c0_127 = arith.constant 0 : index
    %c0_128 = arith.constant 0 : index
    %160 = vector.load %arg8[%c7_126, %c0_127, %c0_128] : memref<9x32x8xf32, #tpu.memory_space<vmem>>, vector<1x32x8xf32>
    %161 = vector.shape_cast %160 : vector<1x32x8xf32> to vector<32x8xf32>
    %cst_129 = arith.constant dense<0.000000e+00> : vector<32x256xf32>
    %162 = tpu.matmul %161, %159, %cst_129 {dimension_numbers = #tpu.dot_dimension_numbers<[1], [0], [0], [1], [0, 0, 1, 1], [], []>} : vector<32x8xf32>, vector<8x256xf32>, vector<32x256xf32> -> vector<32x256xf32>
    %163 = arith.addf %154, %162 : vector<32x256xf32>
    %c239_i32_130 = arith.constant 239 : i32
    %164 = tpu.dynamic_rotate %95 by %c239_i32_130 dim 1 : vector<8x256xf32>, i32 -> vector<8x256xf32>
    %c8_131 = arith.constant 8 : index
    %c0_132 = arith.constant 0 : index
    %c0_133 = arith.constant 0 : index
    %165 = vector.load %arg10[%c8_131, %c0_132, %c0_133] : memref<9x1x256xf32, #tpu.memory_space<vmem>>, vector<1x1x256xf32>
    %166 = vector.shape_cast %165 : vector<1x1x256xf32> to vector<1x256xf32>
    %167 = vector.broadcast %166 : vector<1x256xf32> to vector<8x256xf32>
    %168 = arith.mulf %164, %167 : vector<8x256xf32>
    %c8_134 = arith.constant 8 : index
    %c0_135 = arith.constant 0 : index
    %c0_136 = arith.constant 0 : index
    %169 = vector.load %arg8[%c8_134, %c0_135, %c0_136] : memref<9x32x8xf32, #tpu.memory_space<vmem>>, vector<1x32x8xf32>
    %170 = vector.shape_cast %169 : vector<1x32x8xf32> to vector<32x8xf32>
    %cst_137 = arith.constant dense<0.000000e+00> : vector<32x256xf32>
    %171 = tpu.matmul %170, %168, %cst_137 {dimension_numbers = #tpu.dot_dimension_numbers<[1], [0], [0], [1], [0, 0, 1, 1], [], []>} : vector<32x8xf32>, vector<8x256xf32>, vector<32x256xf32> -> vector<32x256xf32>
    %172 = arith.addf %163, %171 : vector<32x256xf32>
    %c0_138 = arith.constant 0 : index
    %c0_139 = arith.constant 0 : index
    %173 = vector.load %arg9[%c0_138, %c0_139] : memref<32x1xf32, #tpu.memory_space<vmem>>, vector<32x1xf32>
    %174 = vector.broadcast %173 : vector<32x1xf32> to vector<32x256xf32>
    %175 = arith.addf %172, %174 : vector<32x256xf32>
    %c0_140 = arith.constant 0 : index
    %c0_141 = arith.constant 0 : index
    %c0_142 = arith.constant 0 : index
    %176 = vector.load %arg11[%c0_140, %c0_141, %c0_142] : memref<1x32x256xf32, #tpu.memory_space<vmem>>, vector<1x32x256xf32>
    %177 = vector.shape_cast %176 : vector<1x32x256xf32> to vector<32x256xf32>
    %178 = vector.shape_cast %175 : vector<32x256xf32> to vector<1x32x256xf32>
    tpu.vector_store %arg11[%c0_140, %c0_141, %c0_142], %178 {strides = array<i32>} : memref<1x32x256xf32, #tpu.memory_space<vmem>>, vector<1x32x256xf32>,
    return
  }
  func.func @transform_0(%arg0: i32) -> (i32, i32, i32) {
    %c0_i32 = arith.constant 0 : i32
    %c0_i32_0 = arith.constant 0 : i32
    %c0_i32_1 = arith.constant 0 : i32
    return %arg0, %c0_i32, %c0_i32_0 : i32, i32, i32
  }
  func.func @transform_1(%arg0: i32) -> (i32, i32, i32) {
    %c0_i32 = arith.constant 0 : i32
    %c0_i32_0 = arith.constant 0 : i32
    %c0_i32_1 = arith.constant 0 : i32
    return %arg0, %c0_i32, %c0_i32_0 : i32, i32, i32
  }
  func.func @transform_2(%arg0: i32) -> (i32, i32) {
    %c0_i32 = arith.constant 0 : i32
    %c0_i32_0 = arith.constant 0 : i32
    %c0_i32_1 = arith.constant 0 : i32
    return %c0_i32, %c0_i32_0 : i32, i32
  }
  func.func @transform_3(%arg0: i32) -> (i32, i32) {
    %c0_i32 = arith.constant 0 : i32
    %c0_i32_0 = arith.constant 0 : i32
    %c0_i32_1 = arith.constant 0 : i32
    return %c0_i32, %c0_i32_0 : i32, i32
  }
  func.func @transform_4(%arg0: i32) -> (i32, i32) {
    %c0_i32 = arith.constant 0 : i32
    %c0_i32_0 = arith.constant 0 : i32
    %c0_i32_1 = arith.constant 0 : i32
    return %c0_i32, %c0_i32_0 : i32, i32
  }
  func.func @transform_5(%arg0: i32) -> (i32, i32, i32) {
    %c0_i32 = arith.constant 0 : i32
    %c0_i32_0 = arith.constant 0 : i32
    %c0_i32_1 = arith.constant 0 : i32
    %c0_i32_2 = arith.constant 0 : i32
    return %c0_i32, %c0_i32_0, %c0_i32_1 : i32, i32, i32
  }
  func.func @transform_6(%arg0: i32) -> (i32, i32) {
    %c0_i32 = arith.constant 0 : i32
    %c0_i32_0 = arith.constant 0 : i32
    %c0_i32_1 = arith.constant 0 : i32
    return %c0_i32, %c0_i32_0 : i32, i32
  }
  func.func @transform_7(%arg0: i32) -> (i32, i32, i32) {
    %c0_i32 = arith.constant 0 : i32
    %c0_i32_0 = arith.constant 0 : i32
    %c0_i32_1 = arith.constant 0 : i32
    %c0_i32_2 = arith.constant 0 : i32
    return %c0_i32, %c0_i32_0, %c0_i32_1 : i32, i32, i32
  }
  func.func @transform_8(%arg0: i32) -> (i32, i32) {
    %c0_i32 = arith.constant 0 : i32
    %c0_i32_0 = arith.constant 0 : i32
    %c0_i32_1 = arith.constant 0 : i32
    return %c0_i32, %c0_i32_0 : i32, i32
  }
  func.func @transform_9(%arg0: i32) -> (i32, i32, i32) {
    %c0_i32 = arith.constant 0 : i32
    %c0_i32_0 = arith.constant 0 : i32
    %c0_i32_1 = arith.constant 0 : i32
    %c0_i32_2 = arith.constant 0 : i32
    return %c0_i32, %c0_i32_0, %c0_i32_1 : i32, i32, i32
  }
  func.func @transform_10(%arg0: i32) -> (i32, i32, i32) {
    %c0_i32 = arith.constant 0 : i32
    %c0_i32_0 = arith.constant 0 : i32
    %c0_i32_1 = arith.constant 0 : i32
    return %arg0, %c0_i32, %c0_i32_0 : i32, i32, i32
  }
}

</mosaic_0001>

<llo_original>
// kernel: upsample_forward.1
$region0: #{upsample_forward.1}
  #allocation0 [shape = 'u32[]', space=smem, size = 0x4, offset = 0x4, fixed_abs, tag = 'smem constant byte address 0x4 - core index']
  #allocation1 [shape = 'u32[144,128]{1,0:T(1,128)}', space=vmem, size = 0x12000, scoped, tag = 'internal scratch']
  %s0 = inlined_call_operand.vmem [shape: f32[2,4,256], index: 0, kind: input, shape index: {}]
  %s1 = inlined_call_operand.vmem [shape: f32[2,4,256], index: 1, kind: input, shape index: {}]
  %s2 = inlined_call_operand.vmem [shape: f32[8,4], index: 2, kind: input, shape index: {}]
  %s3 = inlined_call_operand.vmem [shape: f32[8,4], index: 3, kind: input, shape index: {}]
  %s4 = inlined_call_operand.vmem [shape: f32[8,1], index: 4, kind: input, shape index: {}]
  %s5 = inlined_call_operand.vmem [shape: f32[9,8,8], index: 5, kind: input, shape index: {}]
  %s6 = inlined_call_operand.vmem [shape: f32[8,1], index: 6, kind: input, shape index: {}]
  %s7 = inlined_call_operand.vmem [shape: f32[9,32,8], index: 7, kind: input, shape index: {}]
  %s8 = inlined_call_operand.vmem [shape: f32[32,1], index: 8, kind: input, shape index: {}]
  %s9 = inlined_call_operand.vmem [shape: f32[9,1,256], index: 9, kind: input, shape index: {}]
  %s10 = inlined_call_operand.vmem [shape: f32[2,32,256], index: 10, kind: output, shape index: {}]
  %s11 = sld [smem:[#allocation0]]
  $region73: #{upsample_forward.1} parent=0
    _
  %s13 = ssub.s32 1, %s11
  %s14 = scalar_select 0, %s13, %s11
  loop: start=0, step=1, limit=4
  $region2: #{upsample_forward.1} parent=0 // loop_pre_header
    _
  $region3: #{upsample_forward.1} parent=0 // loop_header
    %s16 = sphi 0, %s20
    %p17 = scmp.ge.s32.totalorder %s16, 4
    %s26 = sphi 0, %s28
    %s29 = sphi 0, %s26
    %s30 = sphi 0, %s29
    %s46 = sphi 0, %s30
    %s52 = sphi 0, %s54
    %s55 = sphi 0, %s52
    %s56 = sphi 0, %s55
    %s72 = sphi 0, %s56
    %s76 = sphi 0, %s76
    %s78 = sphi 0, %s76
    %s79 = sphi 0, %s78
    %s93 = sphi 0, %s79
    %s97 = sphi 0, %s97
    %s99 = sphi 0, %s97
    %s100 = sphi 0, %s99
    %s114 = sphi 0, %s100
    %s118 = sphi 0, %s118
    %s120 = sphi 0, %s118
    %s121 = sphi 0, %s120
    %s135 = sphi 0, %s121
    %s139 = sphi 0, %s139
    %s141 = sphi 0, %s139
    %s142 = sphi 0, %s141
    %s156 = sphi 0, %s142
    %s160 = sphi 0, %s160
    %s162 = sphi 0, %s160
    %s163 = sphi 0, %s162
    %s177 = sphi 0, %s163
    %s181 = sphi 0, %s181
    %s183 = sphi 0, %s181
    %s184 = sphi 0, %s183
    %s198 = sphi 0, %s184
    %s202 = sphi 0, %s202
    %s204 = sphi 0, %s202
    %s205 = sphi 0, %s204
    %s219 = sphi 0, %s205
    %s223 = sphi 0, %s223
    %s225 = sphi 0, %s223
    %s226 = sphi 0, %s225
    %s240 = sphi 0, %s226
    %s246 = sphi 0, %s248
    %s249 = sphi 0, %s246
    %s250 = sphi 0, %s249
    %s266 = sphi 0, %s250
  $region4: #{upsample_forward.1} parent=0 // loop_header_branch
    %19 = sbr.rel (%p17) target = $region8
  $region5: #{upsample_forward.1} parent=0 // loop_body
    %s21 = ssub.s32 %s16, 1
    %s22 = ssub.s32 %s16, 2
    %s23 = sadd.s32 %s16, 1
    %s24 = ssub.s32 %s16, %s23
    %p25 = scmp.eq.s32.totalorder %s24, 0
    %s27 = sadd.s32 %s26, 1
    %s28 = scalar_select %p25, %s26, %s27
    %p31 = pneg %p25
    %p32 = scmp.eq.s32.totalorder %s16, 1
    %p33 = por %p31, %p32
    %p34 = scmp.ne.s32.totalorder %s26, %s29
    %p35 = scmp.eq.s32.totalorder %s16, 0
    %p36 = por %p34, %p35
    %p37 = scmp.ne.s32.totalorder %s26, %s29
    %p38 = scmp.eq.s32.totalorder %s21, 1
    %p39 = por %p37, %p38
    %p40 = scmp.ne.s32.totalorder %s29, %s30
    %p41 = scmp.eq.s32.totalorder %s21, 0
    %p42 = por %p40, %p41
    %p43 = scmp.ne.s32.totalorder %s29, %s30
    %p44 = scmp.eq.s32.totalorder %s22, 1
    %p45 = por %p43, %p44
    %p47 = scmp.ne.s32.totalorder %s30, %s46
    %p48 = scmp.eq.s32.totalorder %s22, 0
    %p49 = por %p47, %p48
    %s50 = ssub.s32 %s16, %s23
    %p51 = scmp.eq.s32.totalorder %s50, 0
    %s53 = sadd.s32 %s52, 1
    %s54 = scalar_select %p51, %s52, %s53
    %p57 = pneg %p51
    %p58 = scmp.eq.s32.totalorder %s16, 1
    %p59 = por %p57, %p58
    %p60 = scmp.ne.s32.totalorder %s52, %s55
    %p61 = scmp.eq.s32.totalorder %s16, 0
    %p62 = por %p60, %p61
    %p63 = scmp.ne.s32.totalorder %s52, %s55
    %p64 = scmp.eq.s32.totalorder %s21, 1
    %p65 = por %p63, %p64
    %p66 = scmp.ne.s32.totalorder %s55, %s56
    %p67 = scmp.eq.s32.totalorder %s21, 0
    %p68 = por %p66, %p67
    %p69 = scmp.ne.s32.totalorder %s55, %s56
    %p70 = scmp.eq.s32.totalorder %s22, 1
    %p71 = por %p69, %p70
    %p73 = scmp.ne.s32.totalorder %s56, %s72
    %p74 = scmp.eq.s32.totalorder %s22, 0
    %p75 = por %p73, %p74
    %s77 = sadd.s32 %s76, 1
    %p80 = scmp.eq.s32.totalorder %s16, 1
    %p81 = scmp.ne.s32.totalorder %s76, %s78
    %p82 = scmp.eq.s32.totalorder %s16, 0
    %p83 = por %p81, %p82
    %p84 = scmp.ne.s32.totalorder %s76, %s78
    %p85 = scmp.eq.s32.totalorder %s21, 1
    %p86 = por %p84, %p85
    %p87 = scmp.ne.s32.totalorder %s78, %s79
    %p88 = scmp.eq.s32.totalorder %s21, 0
    %p89 = por %p87, %p88
    %p90 = scmp.ne.s32.totalorder %s78, %s79
    %p91 = scmp.eq.s32.totalorder %s22, 1
    %p92 = por %p90, %p91
    %p94 = scmp.ne.s32.totalorder %s79, %s93
    %p95 = scmp.eq.s32.totalorder %s22, 0
    %p96 = por %p94, %p95
    %s98 = sadd.s32 %s97, 1
    %p101 = scmp.eq.s32.totalorder %s16, 1
    %p102 = scmp.ne.s32.totalorder %s97, %s99
    %p103 = scmp.eq.s32.totalorder %s16, 0
    %p104 = por %p102, %p103
    %p105 = scmp.ne.s32.totalorder %s97, %s99
    %p106 = scmp.eq.s32.totalorder %s21, 1
    %p107 = por %p105, %p106
    %p108 = scmp.ne.s32.totalorder %s99, %s100
    %p109 = scmp.eq.s32.totalorder %s21, 0
    %p110 = por %p108, %p109
    %p111 = scmp.ne.s32.totalorder %s99, %s100
    %p112 = scmp.eq.s32.totalorder %s22, 1
    %p113 = por %p111, %p112
    %p115 = scmp.ne.s32.totalorder %s100, %s114
    %p116 = scmp.eq.s32.totalorder %s22, 0
    %p117 = por %p115, %p116
    %s119 = sadd.s32 %s118, 1
    %p122 = scmp.eq.s32.totalorder %s16, 1
    %p123 = scmp.ne.s32.totalorder %s118, %s120
    %p124 = scmp.eq.s32.totalorder %s16, 0
    %p125 = por %p123, %p124
    %p126 = scmp.ne.s32.totalorder %s118, %s120
    %p127 = scmp.eq.s32.totalorder %s21, 1
    %p128 = por %p126, %p127
    %p129 = scmp.ne.s32.totalorder %s120, %s121
    %p130 = scmp.eq.s32.totalorder %s21, 0
    %p131 = por %p129, %p130
    %p132 = scmp.ne.s32.totalorder %s120, %s121
    %p133 = scmp.eq.s32.totalorder %s22, 1
    %p134 = por %p132, %p133
    %p136 = scmp.ne.s32.totalorder %s121, %s135
    %p137 = scmp.eq.s32.totalorder %s22, 0
    %p138 = por %p136, %p137
    %s140 = sadd.s32 %s139, 1
    %p143 = scmp.eq.s32.totalorder %s16, 1
    %p144 = scmp.ne.s32.totalorder %s139, %s141
    %p145 = scmp.eq.s32.totalorder %s16, 0
    %p146 = por %p144, %p145
    %p147 = scmp.ne.s32.totalorder %s139, %s141
    %p148 = scmp.eq.s32.totalorder %s21, 1
    %p149 = por %p147, %p148
    %p150 = scmp.ne.s32.totalorder %s141, %s142
    %p151 = scmp.eq.s32.totalorder %s21, 0
    %p152 = por %p150, %p151
    %p153 = scmp.ne.s32.totalorder %s141, %s142
    %p154 = scmp.eq.s32.totalorder %s22, 1
    %p155 = por %p153, %p154
    %p157 = scmp.ne.s32.totalorder %s142, %s156
    %p158 = scmp.eq.s32.totalorder %s22, 0
    %p159 = por %p157, %p158
    %s161 = sadd.s32 %s160, 1
    %p164 = scmp.eq.s32.totalorder %s16, 1
    %p165 = scmp.ne.s32.totalorder %s160, %s162
    %p166 = scmp.eq.s32.totalorder %s16, 0
    %p167 = por %p165, %p166
    %p168 = scmp.ne.s32.totalorder %s160, %s162
    %p169 = scmp.eq.s32.totalorder %s21, 1
    %p170 = por %p168, %p169
    %p171 = scmp.ne.s32.totalorder %s162, %s163
    %p172 = scmp.eq.s32.totalorder %s21, 0
    %p173 = por %p171, %p172
    %p174 = scmp.ne.s32.totalorder %s162, %s163
    %p175 = scmp.eq.s32.totalorder %s22, 1
    %p176 = por %p174, %p175
    %p178 = scmp.ne.s32.totalorder %s163, %s177
    %p179 = scmp.eq.s32.totalorder %s22, 0
    %p180 = por %p178, %p179
    %s182 = sadd.s32 %s181, 1
    %p185 = scmp.eq.s32.totalorder %s16, 1
    %p186 = scmp.ne.s32.totalorder %s181, %s183
    %p187 = scmp.eq.s32.totalorder %s16, 0
    %p188 = por %p186, %p187
    %p189 = scmp.ne.s32.totalorder %s181, %s183
    %p190 = scmp.eq.s32.totalorder %s21, 1
    %p191 = por %p189, %p190
    %p192 = scmp.ne.s32.totalorder %s183, %s184
    %p193 = scmp.eq.s32.totalorder %s21, 0
    %p194 = por %p192, %p193
    %p195 = scmp.ne.s32.totalorder %s183, %s184
    %p196 = scmp.eq.s32.totalorder %s22, 1
    %p197 = por %p195, %p196
    %p199 = scmp.ne.s32.totalorder %s184, %s198
    %p200 = scmp.eq.s32.totalorder %s22, 0
    %p201 = por %p199, %p200
    %s203 = sadd.s32 %s202, 1
    %p206 = scmp.eq.s32.totalorder %s16, 1
    %p207 = scmp.ne.s32.totalorder %s202, %s204
    %p208 = scmp.eq.s32.totalorder %s16, 0
    %p209 = por %p207, %p208
    %p210 = scmp.ne.s32.totalorder %s202, %s204
    %p211 = scmp.eq.s32.totalorder %s21, 1
    %p212 = por %p210, %p211
    %p213 = scmp.ne.s32.totalorder %s204, %s205
    %p214 = scmp.eq.s32.totalorder %s21, 0
    %p215 = por %p213, %p214
    %p216 = scmp.ne.s32.totalorder %s204, %s205
    %p217 = scmp.eq.s32.totalorder %s22, 1
    %p218 = por %p216, %p217
    %p220 = scmp.ne.s32.totalorder %s205, %s219
    %p221 = scmp.eq.s32.totalorder %s22, 0
    %p222 = por %p220, %p221
    %s224 = sadd.s32 %s223, 1
    %p227 = scmp.eq.s32.totalorder %s16, 1
    %p228 = scmp.ne.s32.totalorder %s223, %s225
    %p229 = scmp.eq.s32.totalorder %s16, 0
    %p230 = por %p228, %p229
    %p231 = scmp.ne.s32.totalorder %s223, %s225
    %p232 = scmp.eq.s32.totalorder %s21, 1
    %p233 = por %p231, %p232
    %p234 = scmp.ne.s32.totalorder %s225, %s226
    %p235 = scmp.eq.s32.totalorder %s21, 0
    %p236 = por %p234, %p235
    %p237 = scmp.ne.s32.totalorder %s225, %s226
    %p238 = scmp.eq.s32.totalorder %s22, 1
    %p239 = por %p237, %p238
    %p241 = scmp.ne.s32.totalorder %s226, %s240
    %p242 = scmp.eq.s32.totalorder %s22, 0
    %p243 = por %p241, %p242
    %s244 = ssub.s32 %s16, %s23
    %p245 = scmp.eq.s32.totalorder %s244, 0
    %s247 = sadd.s32 %s246, 1
    %s248 = scalar_select %p245, %s246, %s247
    %p251 = pneg %p245
    %p252 = scmp.eq.s32.totalorder %s16, 1
    %p253 = por %p251, %p252
    %p254 = scmp.ne.s32.totalorder %s246, %s249
    %p255 = scmp.eq.s32.totalorder %s16, 0
    %p256 = por %p254, %p255
    %p257 = scmp.ne.s32.totalorder %s246, %s249
    %p258 = scmp.eq.s32.totalorder %s21, 1
    %p259 = por %p257, %p258
    %p260 = scmp.ne.s32.totalorder %s249, %s250
    %p261 = scmp.eq.s32.totalorder %s21, 0
    %p262 = por %p260, %p261
    %p263 = scmp.ne.s32.totalorder %s249, %s250
    %p264 = scmp.eq.s32.totalorder %s22, 1
    %p265 = por %p263, %p264
    %p267 = scmp.ne.s32.totalorder %s250, %s266
    %p268 = scmp.eq.s32.totalorder %s22, 0
    %p269 = por %p267, %p268
    %p270 = scmp.le.s32.totalorder 1, %s16
    %p271 = scmp.lt.s32.totalorder %s16, 3
    %p272 = pnand %p270, %p271
    %p273 = pneg %p272
    // Predicated region
    $region9: #{upsample_forward.1} parent=5 // pred_check
      _
    $region10: #{upsample_forward.1} parent=5 // pred_check_branch
      %275 = sbr.rel (%p272) target = $region12
    $region11: #{upsample_forward.1} parent=5 // pred_region
      %s276 = ssub.s32 %s16, 1
      // Predicated region
      $region13: #{upsample_forward.1} parent=11 // pred_check
        %p277 = pneg %p89
      $region14: #{upsample_forward.1} parent=11 // pred_check_branch
        %279 = sbr.rel (%p277) target = $region16
      $region15: #{upsample_forward.1} parent=11 // pred_region
        _
      $region16: #{upsample_forward.1} parent=11 // pred_fallthru
        _
      // Predicated region
      $region17: #{upsample_forward.1} parent=11 // pred_check
        %p280 = pneg %p110
      $region18: #{upsample_forward.1} parent=11 // pred_check_branch
        %282 = sbr.rel (%p280) target = $region20
      $region19: #{upsample_forward.1} parent=11 // pred_region
        _
      $region20: #{upsample_forward.1} parent=11 // pred_fallthru
        _
      // Predicated region
      $region21: #{upsample_forward.1} parent=11 // pred_check
        %p283 = pneg %p131
      $region22: #{upsample_forward.1} parent=11 // pred_check_branch
        %285 = sbr.rel (%p283) target = $region24
      $region23: #{upsample_forward.1} parent=11 // pred_region
        _
      $region24: #{upsample_forward.1} parent=11 // pred_fallthru
        _
      // Predicated region
      $region25: #{upsample_forward.1} parent=11 // pred_check
        %p286 = pneg %p152
      $region26: #{upsample_forward.1} parent=11 // pred_check_branch
        %288 = sbr.rel (%p286) target = $region28
      $region27: #{upsample_forward.1} parent=11 // pred_region
        _
      $region28: #{upsample_forward.1} parent=11 // pred_fallthru
        _
      // Predicated region
      $region29: #{upsample_forward.1} parent=11 // pred_check
        %p289 = pneg %p173
      $region30: #{upsample_forward.1} parent=11 // pred_check_branch
        %291 = sbr.rel (%p289) target = $region32
      $region31: #{upsample_forward.1} parent=11 // pred_region
        _
      $region32: #{upsample_forward.1} parent=11 // pred_fallthru
        _
      // Predicated region
      $region33: #{upsample_forward.1} parent=11 // pred_check
        %p292 = pneg %p194
      $region34: #{upsample_forward.1} parent=11 // pred_check_branch
        %294 = sbr.rel (%p292) target = $region36
      $region35: #{upsample_forward.1} parent=11 // pred_region
        _
      $region36: #{upsample_forward.1} parent=11 // pred_fallthru
        _
      // Predicated region
      $region37: #{upsample_forward.1} parent=11 // pred_check
        %p295 = pneg %p215
      $region38: #{upsample_forward.1} parent=11 // pred_check_branch
        %297 = sbr.rel (%p295) target = $region40
      $region39: #{upsample_forward.1} parent=11 // pred_region
        _
      $region40: #{upsample_forward.1} parent=11 // pred_fallthru
        _
      // Predicated region
      $region41: #{upsample_forward.1} parent=11 // pred_check
        %p298 = pneg %p236
      $region42: #{upsample_forward.1} parent=11 // pred_check_branch
        %300 = sbr.rel (%p298) target = $region44
      $region43: #{upsample_forward.1} parent=11 // pred_region
        _
      $region44: #{upsample_forward.1} parent=11 // pred_fallthru
        _
    $region12: #{upsample_forward.1} parent=5 // pred_fallthru
      _
    %p301 = scmp.lt.s32.totalorder %s16, 2
    // Predicated region
    $region45: #{upsample_forward.1} parent=5 // pred_check
      %p302 = pneg %p301
    $region46: #{upsample_forward.1} parent=5 // pred_check_branch
      %304 = sbr.rel (%p302) target = $region48
    $region47: #{upsample_forward.1} parent=5 // pred_region
      // Predicated region
      $region49: #{upsample_forward.1} parent=47 // pred_check
        %p305 = pneg %p36
      $region50: #{upsample_forward.1} parent=47 // pred_check_branch
        %307 = sbr.rel (%p305) target = $region52
      $region51: #{upsample_forward.1} parent=47 // pred_region
        %p308 = scmp.lt.s32.totalorder %s16, 1
        %s309 = scalar_select %p308, %s16, 1
        %s310 = smul.addr %s309, 2
        %s311 = smul.addr %s310, 4
        %s312 = scalar_lea.vmem %s0, %s311
      $region52: #{upsample_forward.1} parent=47 // pred_fallthru
        _
      // Predicated region
      $region53: #{upsample_forward.1} parent=47 // pred_check
        %p313 = pneg %p62
      $region54: #{upsample_forward.1} parent=47 // pred_check_branch
        %315 = sbr.rel (%p313) target = $region56
      $region55: #{upsample_forward.1} parent=47 // pred_region
        %p316 = scmp.lt.s32.totalorder %s16, 1
        %s317 = scalar_select %p316, %s16, 1
        %s318 = smul.addr %s317, 2
        %s319 = smul.addr %s318, 4
        %s320 = scalar_lea.vmem %s1, %s319
      $region56: #{upsample_forward.1} parent=47 // pred_fallthru
        _
    $region48: #{upsample_forward.1} parent=5 // pred_fallthru
      _
    %p321 = scmp.le.s32.totalorder 1, %s16
    %p322 = scmp.lt.s32.totalorder %s16, 3
    %p323 = pnand %p321, %p322
    %p324 = pneg %p323
    // Predicated region
    $region57: #{upsample_forward.1} parent=5 // pred_check
      _
    $region58: #{upsample_forward.1} parent=5 // pred_check_branch
      %326 = sbr.rel (%p323) target = $region60
    $region59: #{upsample_forward.1} parent=5 // pred_region
      %s327 = ssub.s32 %s16, 1
      %p328 = scmp.lt.s32.totalorder %s21, 1
      %s329 = scalar_select %p328, %s21, 1
      %s330 = smul.addr %s329, 2
      %s331 = smul.addr %s330, 4
      %s332 = scalar_lea.vmem %s0, %s331
      %p333 = pneg %p42
      %p334 = pneg %p39
      %p335 = scmp.lt.s32.totalorder %s21, 1
      %s336 = scalar_select %p335, %s21, 1
      %s337 = smul.addr %s336, 2
      %s338 = smul.addr %s337, 4
      %s339 = scalar_lea.vmem %s1, %s338
      %p340 = pneg %p68
      %p341 = pneg %p65
      %p342 = pneg %p89
      %p343 = pneg %p86
      %p344 = pneg %p110
      %p345 = pneg %p107
      %p346 = pneg %p131
      %p347 = pneg %p128
      %p348 = pneg %p152
      %p349 = pneg %p149
      %p350 = pneg %p173
      %p351 = pneg %p170
      %p352 = pneg %p194
      %p353 = pneg %p191
      %p354 = pneg %p215
      %p355 = pneg %p212
      %p356 = pneg %p236
      %p357 = pneg %p233
      %p358 = pneg %p262
      %p359 = pneg %p259
      %p360 = scmp.lt.s32.totalorder %s21, 1
      %s361 = scalar_select %p360, %s21, 1
      %s362 = smul.addr %s361, 8
      %s363 = smul.addr %s362, 8
      %s364 = scalar_lea.vmem %s10, %s363
      %p365 = scmp.lt.s32.totalorder %s21, 1
      %s366 = scalar_select %p365, %s21, 1
      %s367 = smul.addr %s366, 2
      %s368 = smul.addr %s367, 4
      %s369 = scalar_lea.vmem %s0, %s368
      %p370 = scmp.lt.s32.totalorder %s21, 1
      %s371 = scalar_select %p370, %s21, 1
      %s372 = smul.addr %s371, 2
      %s373 = smul.addr %s372, 4
      %s374 = scalar_lea.vmem %s1, %s373
      %p375 = scmp.lt.s32.totalorder %s21, 1
      %s376 = scalar_select %p375, %s21, 1
      %s377 = smul.addr %s376, 8
      %s378 = smul.addr %s377, 8
      %s379 = scalar_lea.vmem %s10, %s378
      %v380 = vld [vmem:[%s2] sm:$0xff]
      %v381 = vld [vmem:[%s369] sm:$0xff]
      %v382 = vld [vmem:[%s3] sm:$0xff]
      %v383 = vld [vmem:[%s374] sm:$0xff]
      %v385 = vcombine.high %v383, %v383
      %vm386 = vcmask 31744
      %v388 = vsel %vm386, %v382, 0
      %vm390 = vcmask 1043456
      %v391 = vsel %vm390, %v383, 0
      %v393 = vsel %vm390, %v385, 0
      %395 = vmatprep.subr.mxu0 %v393
      %396 = vmatpush1.msra.mxu0 %v391
      %397 = vmatprep.subr.mxu0 0.0
      %398 = vmatpush1.msra.mxu0 0.0
      %399 = vmatprep.subr.mxu0 0.0
      %400 = vmatpush1.msra.mxu0 0.0
      %401 = vmatprep.subr.mxu0 0.0
      %402 = vmatpush1.msra.mxu0 0.0
      %403 = vmatprep.subr.mxu0 0.0
      %404 = vmatpush1.msra.mxu0 0.0
      %405 = vmatprep.subr.mxu0 0.0
      %406 = vmatpush1.msra.mxu0 0.0
      %407 = vmatprep.subr.mxu0 0.0
      %408 = vmatpush1.msra.mxu0 0.0
      %409 = vmatprep.subr.mxu0 0.0
      %410 = vmatpush1.msra.mxu0 0.0
      %411 = vmatprep.subr.mxu0 0.0
      %412 = vmatpush1.msra.mxu0 0.0
      %413 = vmatprep.subr.mxu0 0.0
      %414 = vmatpush1.msra.mxu0 0.0
      %415 = vmatprep.subr.mxu0 0.0
      %416 = vmatpush1.msra.mxu0 0.0
      %417 = vmatprep.subr.mxu0 0.0
      %418 = vmatpush1.msra.mxu0 0.0
      %419 = vmatprep.subr.mxu0 0.0
      %420 = vmatpush1.msra.mxu0 0.0
      %421 = vmatprep.subr.mxu0 0.0
      %422 = vmatpush1.msra.mxu0 0.0
      %423 = vmatprep.subr.mxu0 0.0
      %424 = vmatpush1.msra.mxu0 0.0
      %425 = vmatprep.subr.mxu0 0.0
      %426 = vmatpush1.msra.mxu0 0.0
      %427 = vmatprep.subr.mxu0 0.0
      %428 = vmatpush1.msra.mxu0 0.0
      %429 = vmatprep.subr.mxu0 0.0
      %430 = vmatpush1.msra.mxu0 0.0
      %431 = vmatprep.subr.mxu0 0.0
      %432 = vmatpush1.msra.mxu0 0.0
      %433 = vmatprep.subr.mxu0 0.0
      %434 = vmatpush1.msra.mxu0 0.0
      %435 = vmatprep.subr.mxu0 0.0
      %436 = vmatpush1.msra.mxu0 0.0
      %437 = vmatprep.subr.mxu0 0.0
      %438 = vmatpush1.msra.mxu0 0.0
      %439 = vmatprep.subr.mxu0 0.0
      %440 = vmatpush1.msra.mxu0 0.0
      %441 = vmatprep.subr.mxu0 0.0
      %442 = vmatpush1.msra.mxu0 0.0
      %443 = vmatprep.subr.mxu0 0.0
      %444 = vmatpush1.msra.mxu0 0.0
      %445 = vmatprep.subr.mxu0 0.0
      %446 = vmatpush1.msra.mxu0 0.0
      %447 = vmatprep.subr.mxu0 0.0
      %448 = vmatpush1.msra.mxu0 0.0
      %449 = vmatprep.subr.mxu0 0.0
      %450 = vmatpush1.msra.mxu0 0.0
      %451 = vmatprep.subr.mxu0 0.0
      %452 = vmatpush1.msra.mxu0 0.0
      %453 = vmatprep.subr.mxu0 0.0
      %454 = vmatpush1.msra.mxu0 0.0
      %455 = vmatprep.subr.mxu0 0.0
      %456 = vmatpush1.msra.mxu0 0.0
      %457 = vmatprep.subr.mxu0 0.0
      %458 = vmatpush1.msra.mxu0 0.0
      %459 = vmatprep.mubr.f32.mxu0 0.0
      %460 = vmatmul.mubr.f32.gmra.mrb[0].mxu0 %v388
      %v461 = vpop.f32.mrb[0].mxu0
      %v462 = vadd.f32 0.0, %v461
      %v463 = vpop.f32.mrb[0].mxu0
      %v464 = vadd.f32 0.0, %v463
      %465 = vdwg.mxu0
      %v467 = vcombine.high %v381, %v381
      %v469 = vsel %vm386, %v380, 0
      %v471 = vsel %vm390, %v381, 0
      %v473 = vsel %vm390, %v467, 0
      %475 = vmatprep.subr.mxu0 %v473
      %476 = vmatpush1.msra.mxu0 %v471
      %477 = vmatprep.subr.mxu0 0.0
      %478 = vmatpush1.msra.mxu0 0.0
      %479 = vmatprep.subr.mxu0 0.0
      %480 = vmatpush1.msra.mxu0 0.0
      %481 = vmatprep.subr.mxu0 0.0
      %482 = vmatpush1.msra.mxu0 0.0
      %483 = vmatprep.subr.mxu0 0.0
      %484 = vmatpush1.msra.mxu0 0.0
      %485 = vmatprep.subr.mxu0 0.0
      %486 = vmatpush1.msra.mxu0 0.0
      %487 = vmatprep.subr.mxu0 0.0
      %488 = vmatpush1.msra.mxu0 0.0
      %489 = vmatprep.subr.mxu0 0.0
      %490 = vmatpush1.msra.mxu0 0.0
      %491 = vmatprep.subr.mxu0 0.0
      %492 = vmatpush1.msra.mxu0 0.0
      %493 = vmatprep.subr.mxu0 0.0
      %494 = vmatpush1.msra.mxu0 0.0
      %495 = vmatprep.subr.mxu0 0.0
      %496 = vmatpush1.msra.mxu0 0.0
      %497 = vmatprep.subr.mxu0 0.0
      %498 = vmatpush1.msra.mxu0 0.0
      %499 = vmatprep.subr.mxu0 0.0
      %500 = vmatpush1.msra.mxu0 0.0
      %501 = vmatprep.subr.mxu0 0.0
      %502 = vmatpush1.msra.mxu0 0.0
      %503 = vmatprep.subr.mxu0 0.0
      %504 = vmatpush1.msra.mxu0 0.0
      %505 = vmatprep.subr.mxu0 0.0
      %506 = vmatpush1.msra.mxu0 0.0
      %507 = vmatprep.subr.mxu0 0.0
      %508 = vmatpush1.msra.mxu0 0.0
      %509 = vmatprep.subr.mxu0 0.0
      %510 = vmatpush1.msra.mxu0 0.0
      %511 = vmatprep.subr.mxu0 0.0
      %512 = vmatpush1.msra.mxu0 0.0
      %513 = vmatprep.subr.mxu0 0.0
      %514 = vmatpush1.msra.mxu0 0.0
      %515 = vmatprep.subr.mxu0 0.0
      %516 = vmatpush1.msra.mxu0 0.0
      %517 = vmatprep.subr.mxu0 0.0
      %518 = vmatpush1.msra.mxu0 0.0
      %519 = vmatprep.subr.mxu0 0.0
      %520 = vmatpush1.msra.mxu0 0.0
      %521 = vmatprep.subr.mxu0 0.0
      %522 = vmatpush1.msra.mxu0 0.0
      %523 = vmatprep.subr.mxu0 0.0
      %524 = vmatpush1.msra.mxu0 0.0
      %525 = vmatprep.subr.mxu0 0.0
      %526 = vmatpush1.msra.mxu0 0.0
      %527 = vmatprep.subr.mxu0 0.0
      %528 = vmatpush1.msra.mxu0 0.0
      %529 = vmatprep.subr.mxu0 0.0
      %530 = vmatpush1.msra.mxu0 0.0
      %531 = vmatprep.subr.mxu0 0.0
      %532 = vmatpush1.msra.mxu0 0.0
      %533 = vmatprep.subr.mxu0 0.0
      %534 = vmatpush1.msra.mxu0 0.0
      %535 = vmatprep.subr.mxu0 0.0
      %536 = vmatpush1.msra.mxu0 0.0
      %537 = vmatprep.subr.mxu0 0.0
      %538 = vmatpush1.msra.mxu0 0.0
      %539 = vmatprep.mubr.f32.mxu0 0.0
      %540 = vmatmul.mubr.f32.gmra.mrb[0].mxu0 %v469
      %v541 = vpop.f32.mrb[0].mxu0
      %v542 = vadd.f32 %v462, %v541
      %v543 = vpop.f32.mrb[0].mxu0
      %v544 = vadd.f32 %v464, %v543
      %545 = vdwg.mxu0
      %v546 = vld [vmem:[%s4] sm:$0xff]
      %548 = vset.pattern.permute.xlu0 0
      %549 = vperm.xlu0 %548, %v546
      %v550 = vpop.permute.xlu0 %549
      %v552 = vadd.f32 %v542, %v550
      %v553 = vadd.f32 %v544, %v550
      %v554 = vmax.f32 %v552, 0.0
      %v555 = vmax.f32 %v553, 0.0
      %556 = vrot.lane.b32.xlu0 %v554, 17
      %v557 = vpop.permute.xlu0 %556
      %558 = vrot.lane.b32.xlu0 %v555, 17
      %v559 = vpop.permute.xlu0 %558
      %v560 = vlaneseq
      %v561 = vand.u32 %v560, 127
      %vm562 = vcmp.lt.s32.totalorder %v561, 17
      %v563 = vsel %vm562, %v557, %v559
      %v564 = vsel %vm562, %v559, %v557
      %v565 = vld [vmem:[%s9] sm:$0x3]
      %v567 = vlaneseq
      %v568 = vshrl.u32 %v567, 7
      %v569 = vsub.s32 0, %v568
      %v570 = vrot.slane %v565, %v569
      %v571 = vlaneseq
      %v572 = vshrl.u32 %v571, 7
      %v573 = vsub.s32 1, %v572
      %v574 = vrot.slane %v565, %v573
      %v577 = vmul.f32 %v564, %v570
      %v578 = vmul.f32 %v563, %v574
      %v579 = vld [vmem:[%s5] sm:$0xff]
      %580 = vrot.lane.b32.xlu0 %v554, 16
      %v581 = vpop.permute.xlu0 %580
      %582 = vrot.lane.b32.xlu0 %v555, 16
      %v583 = vpop.permute.xlu0 %582
      %vm584 = vcmp.lt.s32.totalorder %v561, 16
      %v585 = vsel %vm584, %v581, %v583
      %v586 = vsel %vm584, %v583, %v581
      %s587 = scalar_lea.vmem %s9, 2
      %v588 = vld [vmem:[%s587] sm:$0x3]
      %v590 = vlaneseq
      %v591 = vshrl.u32 %v590, 7
      %v592 = vsub.s32 0, %v591
      %v593 = vrot.slane %v588, %v592
      %v594 = vlaneseq
      %v595 = vshrl.u32 %v594, 7
      %v596 = vsub.s32 1, %v595
      %v597 = vrot.slane %v588, %v596
      %v600 = vmul.f32 %v586, %v593
      %v601 = vmul.f32 %v585, %v597
      %s602 = scalar_lea.vmem %s5, 8
      %v603 = vld [vmem:[%s602] sm:$0xff]
      %vm604 = vcmask 64512
      %v606 = vsel %vm604, %v603, 0
      %608 = vmatprep.subr.mxu0 %v601
      %609 = vmatpush1.msra.mxu0 %v600
      %610 = vmatprep.subr.mxu0 0.0
      %611 = vmatpush1.msra.mxu0 0.0
      %612 = vmatprep.subr.mxu0 0.0
      %613 = vmatpush1.msra.mxu0 0.0
      %614 = vmatprep.subr.mxu0 0.0
      %615 = vmatpush1.msra.mxu0 0.0
      %616 = vmatprep.subr.mxu0 0.0
      %617 = vmatpush1.msra.mxu0 0.0
      %618 = vmatprep.subr.mxu0 0.0
      %619 = vmatpush1.msra.mxu0 0.0
      %620 = vmatprep.subr.mxu0 0.0
      %621 = vmatpush1.msra.mxu0 0.0
      %622 = vmatprep.subr.mxu0 0.0
      %623 = vmatpush1.msra.mxu0 0.0
      %624 = vmatprep.subr.mxu0 0.0
      %625 = vmatpush1.msra.mxu0 0.0
      %626 = vmatprep.subr.mxu0 0.0
      %627 = vmatpush1.msra.mxu0 0.0
      %628 = vmatprep.subr.mxu0 0.0
      %629 = vmatpush1.msra.mxu0 0.0
      %630 = vmatprep.subr.mxu0 0.0
      %631 = vmatpush1.msra.mxu0 0.0
      %632 = vmatprep.subr.mxu0 0.0
      %633 = vmatpush1.msra.mxu0 0.0
      %634 = vmatprep.subr.mxu0 0.0
      %635 = vmatpush1.msra.mxu0 0.0
      %636 = vmatprep.subr.mxu0 0.0
      %637 = vmatpush1.msra.mxu0 0.0
      %638 = vmatprep.subr.mxu0 0.0
      %639 = vmatpush1.msra.mxu0 0.0
      %640 = vmatprep.subr.mxu0 0.0
      %641 = vmatpush1.msra.mxu0 0.0
      %642 = vmatprep.subr.mxu0 0.0
      %643 = vmatpush1.msra.mxu0 0.0
      %644 = vmatprep.subr.mxu0 0.0
      %645 = vmatpush1.msra.mxu0 0.0
      %646 = vmatprep.subr.mxu0 0.0
      %647 = vmatpush1.msra.mxu0 0.0
      %648 = vmatprep.subr.mxu0 0.0
      %649 = vmatpush1.msra.mxu0 0.0
      %650 = vmatprep.subr.mxu0 0.0
      %651 = vmatpush1.msra.mxu0 0.0
      %652 = vmatprep.subr.mxu0 0.0
      %653 = vmatpush1.msra.mxu0 0.0
      %654 = vmatprep.subr.mxu0 0.0
      %655 = vmatpush1.msra.mxu0 0.0
      %656 = vmatprep.subr.mxu0 0.0
      %657 = vmatpush1.msra.mxu0 0.0
      %658 = vmatprep.subr.mxu0 0.0
      %659 = vmatpush1.msra.mxu0 0.0
      %660 = vmatprep.subr.mxu0 0.0
      %661 = vmatpush1.msra.mxu0 0.0
      %662 = vmatprep.subr.mxu0 0.0
      %663 = vmatpush1.msra.mxu0 0.0
      %664 = vmatprep.subr.mxu0 0.0
      %665 = vmatpush1.msra.mxu0 0.0
      %666 = vmatprep.subr.mxu0 0.0
      %667 = vmatpush1.msra.mxu0 0.0
      %668 = vmatprep.subr.mxu0 0.0
      %669 = vmatpush1.msra.mxu0 0.0
      %670 = vmatprep.subr.mxu0 0.0
      %671 = vmatpush1.msra.mxu0 0.0
      %672 = vmatprep.mubr.f32.mxu0 0.0
      %673 = vmatmul.mubr.f32.gmra.mrb[0].mxu0 %v606
      %v674 = vpop.f32.mrb[0].mxu0
      %v675 = vadd.f32 0.0, %v674
      %v676 = vpop.f32.mrb[0].mxu0
      %v677 = vadd.f32 0.0, %v676
      %678 = vdwg.mxu0
      %v680 = vsel %vm604, %v579, 0
      %682 = vmatprep.subr.mxu0 %v578
      %683 = vmatpush1.msra.mxu0 %v577
      %684 = vmatprep.subr.mxu0 0.0
      %685 = vmatpush1.msra.mxu0 0.0
      %686 = vmatprep.subr.mxu0 0.0
      %687 = vmatpush1.msra.mxu0 0.0
      %688 = vmatprep.subr.mxu0 0.0
      %689 = vmatpush1.msra.mxu0 0.0
      %690 = vmatprep.subr.mxu0 0.0
      %691 = vmatpush1.msra.mxu0 0.0
      %692 = vmatprep.subr.mxu0 0.0
      %693 = vmatpush1.msra.mxu0 0.0
      %694 = vmatprep.subr.mxu0 0.0
      %695 = vmatpush1.msra.mxu0 0.0
      %696 = vmatprep.subr.mxu0 0.0
      %697 = vmatpush1.msra.mxu0 0.0
      %698 = vmatprep.subr.mxu0 0.0
      %699 = vmatpush1.msra.mxu0 0.0
      %700 = vmatprep.subr.mxu0 0.0
      %701 = vmatpush1.msra.mxu0 0.0
      %702 = vmatprep.subr.mxu0 0.0
      %703 = vmatpush1.msra.mxu0 0.0
      %704 = vmatprep.subr.mxu0 0.0
      %705 = vmatpush1.msra.mxu0 0.0
      %706 = vmatprep.subr.mxu0 0.0
      %707 = vmatpush1.msra.mxu0 0.0
      %708 = vmatprep.subr.mxu0 0.0
      %709 = vmatpush1.msra.mxu0 0.0
      %710 = vmatprep.subr.mxu0 0.0
      %711 = vmatpush1.msra.mxu0 0.0
      %712 = vmatprep.subr.mxu0 0.0
      %713 = vmatpush1.msra.mxu0 0.0
      %714 = vmatprep.subr.mxu0 0.0
      %715 = vmatpush1.msra.mxu0 0.0
      %716 = vmatprep.subr.mxu0 0.0
      %717 = vmatpush1.msra.mxu0 0.0
      %718 = vmatprep.subr.mxu0 0.0
      %719 = vmatpush1.msra.mxu0 0.0
      %720 = vmatprep.subr.mxu0 0.0
      %721 = vmatpush1.msra.mxu0 0.0
      %722 = vmatprep.subr.mxu0 0.0
      %723 = vmatpush1.msra.mxu0 0.0
      %724 = vmatprep.subr.mxu0 0.0
      %725 = vmatpush1.msra.mxu0 0.0
      %726 = vmatprep.subr.mxu0 0.0
      %727 = vmatpush1.msra.mxu0 0.0
      %728 = vmatprep.subr.mxu0 0.0
      %729 = vmatpush1.msra.mxu0 0.0
      %730 = vmatprep.subr.mxu0 0.0
      %731 = vmatpush1.msra.mxu0 0.0
      %732 = vmatprep.subr.mxu0 0.0
      %733 = vmatpush1.msra.mxu0 0.0
      %734 = vmatprep.subr.mxu0 0.0
      %735 = vmatpush1.msra.mxu0 0.0
      %736 = vmatprep.subr.mxu0 0.0
      %737 = vmatpush1.msra.mxu0 0.0
      %738 = vmatprep.subr.mxu0 0.0
      %739 = vmatpush1.msra.mxu0 0.0
      %740 = vmatprep.subr.mxu0 0.0
      %741 = vmatpush1.msra.mxu0 0.0
      %742 = vmatprep.subr.mxu0 0.0
      %743 = vmatpush1.msra.mxu0 0.0
      %744 = vmatprep.subr.mxu0 0.0
      %745 = vmatpush1.msra.mxu0 0.0
      %746 = vmatprep.mubr.f32.mxu0 0.0
      %747 = vmatmul.mubr.f32.gmra.mrb[0].mxu0 %v680
      %v748 = vpop.f32.mrb[0].mxu0
      %v749 = vadd.f32 %v675, %v748
      %v750 = vpop.f32.mrb[0].mxu0
      %v751 = vadd.f32 %v677, %v750
      %752 = vdwg.mxu0
      %753 = vrot.lane.b32.xlu0 %v554, 15
      %v754 = vpop.permute.xlu0 %753
      %755 = vrot.lane.b32.xlu0 %v555, 15
      %v756 = vpop.permute.xlu0 %755
      %vm757 = vcmp.lt.s32.totalorder %v561, 15
      %v758 = vsel %vm757, %v754, %v756
      %v759 = vsel %vm757, %v756, %v754
      %s760 = scalar_lea.vmem %s9, 4
      %v761 = vld [vmem:[%s760] sm:$0x3]
      %v763 = vlaneseq
      %v764 = vshrl.u32 %v763, 7
      %v765 = vsub.s32 0, %v764
      %v766 = vrot.slane %v761, %v765
      %v767 = vlaneseq
      %v768 = vshrl.u32 %v767, 7
      %v769 = vsub.s32 1, %v768
      %v770 = vrot.slane %v761, %v769
      %v773 = vmul.f32 %v759, %v766
      %v774 = vmul.f32 %v758, %v770
      %s775 = scalar_lea.vmem %s5, 16
      %v776 = vld [vmem:[%s775] sm:$0xff]
      %v778 = vsel %vm604, %v776, 0
      %780 = vmatprep.subr.mxu0 %v774
      %781 = vmatpush1.msra.mxu0 %v773
      %782 = vmatprep.subr.mxu0 0.0
      %783 = vmatpush1.msra.mxu0 0.0
      %784 = vmatprep.subr.mxu0 0.0
      %785 = vmatpush1.msra.mxu0 0.0
      %786 = vmatprep.subr.mxu0 0.0
      %787 = vmatpush1.msra.mxu0 0.0
      %788 = vmatprep.subr.mxu0 0.0
      %789 = vmatpush1.msra.mxu0 0.0
      %790 = vmatprep.subr.mxu0 0.0
      %791 = vmatpush1.msra.mxu0 0.0
      %792 = vmatprep.subr.mxu0 0.0
      %793 = vmatpush1.msra.mxu0 0.0
      %794 = vmatprep.subr.mxu0 0.0
      %795 = vmatpush1.msra.mxu0 0.0
      %796 = vmatprep.subr.mxu0 0.0
      %797 = vmatpush1.msra.mxu0 0.0
      %798 = vmatprep.subr.mxu0 0.0
      %799 = vmatpush1.msra.mxu0 0.0
      %800 = vmatprep.subr.mxu0 0.0
      %801 = vmatpush1.msra.mxu0 0.0
      %802 = vmatprep.subr.mxu0 0.0
      %803 = vmatpush1.msra.mxu0 0.0
      %804 = vmatprep.subr.mxu0 0.0
      %805 = vmatpush1.msra.mxu0 0.0
      %806 = vmatprep.subr.mxu0 0.0
      %807 = vmatpush1.msra.mxu0 0.0
      %808 = vmatprep.subr.mxu0 0.0
      %809 = vmatpush1.msra.mxu0 0.0
      %810 = vmatprep.subr.mxu0 0.0
      %811 = vmatpush1.msra.mxu0 0.0
      %812 = vmatprep.subr.mxu0 0.0
      %813 = vmatpush1.msra.mxu0 0.0
      %814 = vmatprep.subr.mxu0 0.0
      %815 = vmatpush1.msra.mxu0 0.0
      %816 = vmatprep.subr.mxu0 0.0
      %817 = vmatpush1.msra.mxu0 0.0
      %818 = vmatprep.subr.mxu0 0.0
      %819 = vmatpush1.msra.mxu0 0.0
      %820 = vmatprep.subr.mxu0 0.0
      %821 = vmatpush1.msra.mxu0 0.0
      %822 = vmatprep.subr.mxu0 0.0
      %823 = vmatpush1.msra.mxu0 0.0
      %824 = vmatprep.subr.mxu0 0.0
      %825 = vmatpush1.msra.mxu0 0.0
      %826 = vmatprep.subr.mxu0 0.0
      %827 = vmatpush1.msra.mxu0 0.0
      %828 = vmatprep.subr.mxu0 0.0
      %829 = vmatpush1.msra.mxu0 0.0
      %830 = vmatprep.subr.mxu0 0.0
      %831 = vmatpush1.msra.mxu0 0.0
      %832 = vmatprep.subr.mxu0 0.0
      %833 = vmatpush1.msra.mxu0 0.0
      %834 = vmatprep.subr.mxu0 0.0
      %835 = vmatpush1.msra.mxu0 0.0
      %836 = vmatprep.subr.mxu0 0.0
      %837 = vmatpush1.msra.mxu0 0.0
      %838 = vmatprep.subr.mxu0 0.0
      %839 = vmatpush1.msra.mxu0 0.0
      %840 = vmatprep.subr.mxu0 0.0
      %841 = vmatpush1.msra.mxu0 0.0
      %842 = vmatprep.subr.mxu0 0.0
      %843 = vmatpush1.msra.mxu0 0.0
      %844 = vmatprep.mubr.f32.mxu0 0.0
      %845 = vmatmul.mubr.f32.gmra.mrb[0].mxu0 %v778
      %v846 = vpop.f32.mrb[0].mxu0
      %v847 = vadd.f32 0.0, %v846
      %v848 = vpop.f32.mrb[0].mxu0
      %v849 = vadd.f32 0.0, %v848
      %850 = vdwg.mxu0
      %v851 = vadd.f32 %v749, %v847
      %v852 = vadd.f32 %v751, %v849
      %853 = vrot.lane.b32.xlu0 %v554, 1
      %v854 = vpop.permute.xlu0 %853
      %855 = vrot.lane.b32.xlu0 %v555, 1
      %v856 = vpop.permute.xlu0 %855
      %vm857 = vcmp.lt.s32.totalorder %v561, 1
      %v858 = vsel %vm857, %v854, %v856
      %v859 = vsel %vm857, %v856, %v854
      %s860 = scalar_lea.vmem %s9, 6
      %v861 = vld [vmem:[%s860] sm:$0x3]
      %v863 = vlaneseq
      %v864 = vshrl.u32 %v863, 7
      %v865 = vsub.s32 0, %v864
      %v866 = vrot.slane %v861, %v865
      %v867 = vlaneseq
      %v868 = vshrl.u32 %v867, 7
      %v869 = vsub.s32 1, %v868
      %v870 = vrot.slane %v861, %v869
      %v873 = vmul.f32 %v859, %v866
      %v874 = vmul.f32 %v858, %v870
      %s875 = scalar_lea.vmem %s5, 24
      %v876 = vld [vmem:[%s875] sm:$0xff]
      %v878 = vsel %vm604, %v876, 0
      %880 = vmatprep.subr.mxu0 %v874
      %881 = vmatpush1.msra.mxu0 %v873
      %882 = vmatprep.subr.mxu0 0.0
      %883 = vmatpush1.msra.mxu0 0.0
      %884 = vmatprep.subr.mxu0 0.0
      %885 = vmatpush1.msra.mxu0 0.0
      %886 = vmatprep.subr.mxu0 0.0
      %887 = vmatpush1.msra.mxu0 0.0
      %888 = vmatprep.subr.mxu0 0.0
      %889 = vmatpush1.msra.mxu0 0.0
      %890 = vmatprep.subr.mxu0 0.0
      %891 = vmatpush1.msra.mxu0 0.0
      %892 = vmatprep.subr.mxu0 0.0
      %893 = vmatpush1.msra.mxu0 0.0
      %894 = vmatprep.subr.mxu0 0.0
      %895 = vmatpush1.msra.mxu0 0.0
      %896 = vmatprep.subr.mxu0 0.0
      %897 = vmatpush1.msra.mxu0 0.0
      %898 = vmatprep.subr.mxu0 0.0
      %899 = vmatpush1.msra.mxu0 0.0
      %900 = vmatprep.subr.mxu0 0.0
      %901 = vmatpush1.msra.mxu0 0.0
      %902 = vmatprep.subr.mxu0 0.0
      %903 = vmatpush1.msra.mxu0 0.0
      %904 = vmatprep.subr.mxu0 0.0
      %905 = vmatpush1.msra.mxu0 0.0
      %906 = vmatprep.subr.mxu0 0.0
      %907 = vmatpush1.msra.mxu0 0.0
      %908 = vmatprep.subr.mxu0 0.0
      %909 = vmatpush1.msra.mxu0 0.0
      %910 = vmatprep.subr.mxu0 0.0
      %911 = vmatpush1.msra.mxu0 0.0
      %912 = vmatprep.subr.mxu0 0.0
      %913 = vmatpush1.msra.mxu0 0.0
      %914 = vmatprep.subr.mxu0 0.0
      %915 = vmatpush1.msra.mxu0 0.0
      %916 = vmatprep.subr.mxu0 0.0
      %917 = vmatpush1.msra.mxu0 0.0
      %918 = vmatprep.subr.mxu0 0.0
      %919 = vmatpush1.msra.mxu0 0.0
      %920 = vmatprep.subr.mxu0 0.0
      %921 = vmatpush1.msra.mxu0 0.0
      %922 = vmatprep.subr.mxu0 0.0
      %923 = vmatpush1.msra.mxu0 0.0
      %924 = vmatprep.subr.mxu0 0.0
      %925 = vmatpush1.msra.mxu0 0.0
      %926 = vmatprep.subr.mxu0 0.0
      %927 = vmatpush1.msra.mxu0 0.0
      %928 = vmatprep.subr.mxu0 0.0
      %929 = vmatpush1.msra.mxu0 0.0
      %930 = vmatprep.subr.mxu0 0.0
      %931 = vmatpush1.msra.mxu0 0.0
      %932 = vmatprep.subr.mxu0 0.0
      %933 = vmatpush1.msra.mxu0 0.0
      %934 = vmatprep.subr.mxu0 0.0
      %935 = vmatpush1.msra.mxu0 0.0
      %936 = vmatprep.subr.mxu0 0.0
      %937 = vmatpush1.msra.mxu0 0.0
      %938 = vmatprep.subr.mxu0 0.0
      %939 = vmatpush1.msra.mxu0 0.0
      %940 = vmatprep.subr.mxu0 0.0
      %941 = vmatpush1.msra.mxu0 0.0
      %942 = vmatprep.subr.mxu0 0.0
      %943 = vmatpush1.msra.mxu0 0.0
      %944 = vmatprep.mubr.f32.mxu0 0.0
      %945 = vmatmul.mubr.f32.gmra.mrb[0].mxu0 %v878
      %v946 = vpop.f32.mrb[0].mxu0
      %v947 = vadd.f32 0.0, %v946
      %v948 = vpop.f32.mrb[0].mxu0
      %v949 = vadd.f32 0.0, %v948
      %950 = vdwg.mxu0
      %v951 = vadd.f32 %v851, %v947
      %v952 = vadd.f32 %v852, %v949
      %s953 = scalar_lea.vmem %s5, 32
      %v954 = vld [vmem:[%s953] sm:$0xff]
      %v956 = vsel %vm604, %v954, 0
      %958 = vmatprep.subr.mxu0 %v555
      %959 = vmatpush1.msra.mxu0 %v554
      %960 = vmatprep.subr.mxu0 0.0
      %961 = vmatpush1.msra.mxu0 0.0
      %962 = vmatprep.subr.mxu0 0.0
      %963 = vmatpush1.msra.mxu0 0.0
      %964 = vmatprep.subr.mxu0 0.0
      %965 = vmatpush1.msra.mxu0 0.0
      %966 = vmatprep.subr.mxu0 0.0
      %967 = vmatpush1.msra.mxu0 0.0
      %968 = vmatprep.subr.mxu0 0.0
      %969 = vmatpush1.msra.mxu0 0.0
      %970 = vmatprep.subr.mxu0 0.0
      %971 = vmatpush1.msra.mxu0 0.0
      %972 = vmatprep.subr.mxu0 0.0
      %973 = vmatpush1.msra.mxu0 0.0
      %974 = vmatprep.subr.mxu0 0.0
      %975 = vmatpush1.msra.mxu0 0.0
      %976 = vmatprep.subr.mxu0 0.0
      %977 = vmatpush1.msra.mxu0 0.0
      %978 = vmatprep.subr.mxu0 0.0
      %979 = vmatpush1.msra.mxu0 0.0
      %980 = vmatprep.subr.mxu0 0.0
      %981 = vmatpush1.msra.mxu0 0.0
      %982 = vmatprep.subr.mxu0 0.0
      %983 = vmatpush1.msra.mxu0 0.0
      %984 = vmatprep.subr.mxu0 0.0
      %985 = vmatpush1.msra.mxu0 0.0
      %986 = vmatprep.subr.mxu0 0.0
      %987 = vmatpush1.msra.mxu0 0.0
      %988 = vmatprep.subr.mxu0 0.0
      %989 = vmatpush1.msra.mxu0 0.0
      %990 = vmatprep.subr.mxu0 0.0
      %991 = vmatpush1.msra.mxu0 0.0
      %992 = vmatprep.subr.mxu0 0.0
      %993 = vmatpush1.msra.mxu0 0.0
      %994 = vmatprep.subr.mxu0 0.0
      %995 = vmatpush1.msra.mxu0 0.0
      %996 = vmatprep.subr.mxu0 0.0
      %997 = vmatpush1.msra.mxu0 0.0
      %998 = vmatprep.subr.mxu0 0.0
      %999 = vmatpush1.msra.mxu0 0.0
      %1000 = vmatprep.subr.mxu0 0.0
      %1001 = vmatpush1.msra.mxu0 0.0
      %1002 = vmatprep.subr.mxu0 0.0
      %1003 = vmatpush1.msra.mxu0 0.0
      %1004 = vmatprep.subr.mxu0 0.0
      %1005 = vmatpush1.msra.mxu0 0.0
      %1006 = vmatprep.subr.mxu0 0.0
      %1007 = vmatpush1.msra.mxu0 0.0
      %1008 = vmatprep.subr.mxu0 0.0
      %1009 = vmatpush1.msra.mxu0 0.0
      %1010 = vmatprep.subr.mxu0 0.0
      %1011 = vmatpush1.msra.mxu0 0.0
      %1012 = vmatprep.subr.mxu0 0.0
      %1013 = vmatpush1.msra.mxu0 0.0
      %1014 = vmatprep.subr.mxu0 0.0
      %1015 = vmatpush1.msra.mxu0 0.0
      %1016 = vmatprep.subr.mxu0 0.0
      %1017 = vmatpush1.msra.mxu0 0.0
      %1018 = vmatprep.subr.mxu0 0.0
      %1019 = vmatpush1.msra.mxu0 0.0
      %1020 = vmatprep.subr.mxu0 0.0
      %1021 = vmatpush1.msra.mxu0 0.0
      %1022 = vmatprep.mubr.f32.mxu0 0.0
      %1023 = vmatmul.mubr.f32.gmra.mrb[0].mxu0 %v956
      %v1024 = vpop.f32.mrb[0].mxu0
      %v1025 = vadd.f32 0.0, %v1024
      %v1026 = vpop.f32.mrb[0].mxu0
      %v1027 = vadd.f32 0.0, %v1026
      %1028 = vdwg.mxu0
      %v1029 = vadd.f32 %v951, %v1025
      %v1030 = vadd.f32 %v952, %v1027
      %1031 = vrot.lane.b32.xlu0 %v554, 127
      %v1032 = vpop.permute.xlu0 %1031
      %1033 = vrot.lane.b32.xlu0 %v555, 127
      %v1034 = vpop.permute.xlu0 %1033
      %vm1035 = vcmp.lt.s32.totalorder %v561, 127
      %v1036 = vsel %vm1035, %v1032, %v1034
      %v1037 = vsel %vm1035, %v1034, %v1032
      %s1038 = scalar_lea.vmem %s9, 10
      %v1039 = vld [vmem:[%s1038] sm:$0x3]
      %v1041 = vlaneseq
      %v1042 = vshrl.u32 %v1041, 7
      %v1043 = vsub.s32 0, %v1042
      %v1044 = vrot.slane %v1039, %v1043
      %v1045 = vlaneseq
      %v1046 = vshrl.u32 %v1045, 7
      %v1047 = vsub.s32 1, %v1046
      %v1048 = vrot.slane %v1039, %v1047
      %v1051 = vmul.f32 %v1036, %v1044
      %v1052 = vmul.f32 %v1037, %v1048
      %s1053 = scalar_lea.vmem %s5, 40
      %v1054 = vld [vmem:[%s1053] sm:$0xff]
      %v1056 = vsel %vm604, %v1054, 0
      %1058 = vmatprep.subr.mxu0 %v1052
      %1059 = vmatpush1.msra.mxu0 %v1051
      %1060 = vmatprep.subr.mxu0 0.0
      %1061 = vmatpush1.msra.mxu0 0.0
      %1062 = vmatprep.subr.mxu0 0.0
      %1063 = vmatpush1.msra.mxu0 0.0
      %1064 = vmatprep.subr.mxu0 0.0
      %1065 = vmatpush1.msra.mxu0 0.0
      %1066 = vmatprep.subr.mxu0 0.0
      %1067 = vmatpush1.msra.mxu0 0.0
      %1068 = vmatprep.subr.mxu0 0.0
      %1069 = vmatpush1.msra.mxu0 0.0
      %1070 = vmatprep.subr.mxu0 0.0
      %1071 = vmatpush1.msra.mxu0 0.0
      %1072 = vmatprep.subr.mxu0 0.0
      %1073 = vmatpush1.msra.mxu0 0.0
      %1074 = vmatprep.subr.mxu0 0.0
      %1075 = vmatpush1.msra.mxu0 0.0
      %1076 = vmatprep.subr.mxu0 0.0
      %1077 = vmatpush1.msra.mxu0 0.0
      %1078 = vmatprep.subr.mxu0 0.0
      %1079 = vmatpush1.msra.mxu0 0.0
      %1080 = vmatprep.subr.mxu0 0.0
      %1081 = vmatpush1.msra.mxu0 0.0
      %1082 = vmatprep.subr.mxu0 0.0
      %1083 = vmatpush1.msra.mxu0 0.0
      %1084 = vmatprep.subr.mxu0 0.0
      %1085 = vmatpush1.msra.mxu0 0.0
      %1086 = vmatprep.subr.mxu0 0.0
      %1087 = vmatpush1.msra.mxu0 0.0
      %1088 = vmatprep.subr.mxu0 0.0
      %1089 = vmatpush1.msra.mxu0 0.0
      %1090 = vmatprep.subr.mxu0 0.0
      %1091 = vmatpush1.msra.mxu0 0.0
      %1092 = vmatprep.subr.mxu0 0.0
      %1093 = vmatpush1.msra.mxu0 0.0
      %1094 = vmatprep.subr.mxu0 0.0
      %1095 = vmatpush1.msra.mxu0 0.0
      %1096 = vmatprep.subr.mxu0 0.0
      %1097 = vmatpush1.msra.mxu0 0.0
      %1098 = vmatprep.subr.mxu0 0.0
      %1099 = vmatpush1.msra.mxu0 0.0
      %1100 = vmatprep.subr.mxu0 0.0
      %1101 = vmatpush1.msra.mxu0 0.0
      %1102 = vmatprep.subr.mxu0 0.0
      %1103 = vmatpush1.msra.mxu0 0.0
      %1104 = vmatprep.subr.mxu0 0.0
      %1105 = vmatpush1.msra.mxu0 0.0
      %1106 = vmatprep.subr.mxu0 0.0
      %1107 = vmatpush1.msra.mxu0 0.0
      %1108 = vmatprep.subr.mxu0 0.0
      %1109 = vmatpush1.msra.mxu0 0.0
      %1110 = vmatprep.subr.mxu0 0.0
      %1111 = vmatpush1.msra.mxu0 0.0
      %1112 = vmatprep.subr.mxu0 0.0
      %1113 = vmatpush1.msra.mxu0 0.0
      %1114 = vmatprep.subr.mxu0 0.0
      %1115 = vmatpush1.msra.mxu0 0.0
      %1116 = vmatprep.subr.mxu0 0.0
      %1117 = vmatpush1.msra.mxu0 0.0
      %1118 = vmatprep.subr.mxu0 0.0
      %1119 = vmatpush1.msra.mxu0 0.0
      %1120 = vmatprep.subr.mxu0 0.0
      %1121 = vmatpush1.msra.mxu0 0.0
      %1122 = vmatprep.mubr.f32.mxu0 0.0
      %1123 = vmatmul.mubr.f32.gmra.mrb[0].mxu0 %v1056
      %v1124 = vpop.f32.mrb[0].mxu0
      %v1125 = vadd.f32 0.0, %v1124
      %v1126 = vpop.f32.mrb[0].mxu0
      %v1127 = vadd.f32 0.0, %v1126
      %1128 = vdwg.mxu0
      %v1129 = vadd.f32 %v1029, %v1125
      %v1130 = vadd.f32 %v1030, %v1127
      %1131 = vrot.lane.b32.xlu0 %v554, 113
      %v1132 = vpop.permute.xlu0 %1131
      %1133 = vrot.lane.b32.xlu0 %v555, 113
      %v1134 = vpop.permute.xlu0 %1133
      %vm1135 = vcmp.lt.s32.totalorder %v561, 113
      %v1136 = vsel %vm1135, %v1132, %v1134
      %v1137 = vsel %vm1135, %v1134, %v1132
      %s1138 = scalar_lea.vmem %s9, 12
      %v1139 = vld [vmem:[%s1138] sm:$0x3]
      %v1141 = vlaneseq
      %v1142 = vshrl.u32 %v1141, 7
      %v1143 = vsub.s32 0, %v1142
      %v1144 = vrot.slane %v1139, %v1143
      %v1145 = vlaneseq
      %v1146 = vshrl.u32 %v1145, 7
      %v1147 = vsub.s32 1, %v1146
      %v1148 = vrot.slane %v1139, %v1147
      %v1151 = vmul.f32 %v1136, %v1144
      %v1152 = vmul.f32 %v1137, %v1148
      %s1153 = scalar_lea.vmem %s5, 48
      %v1154 = vld [vmem:[%s1153] sm:$0xff]
      %v1156 = vsel %vm604, %v1154, 0
      %1158 = vmatprep.subr.mxu0 %v1152
      %1159 = vmatpush1.msra.mxu0 %v1151
      %1160 = vmatprep.subr.mxu0 0.0
      %1161 = vmatpush1.msra.mxu0 0.0
      %1162 = vmatprep.subr.mxu0 0.0
      %1163 = vmatpush1.msra.mxu0 0.0
      %1164 = vmatprep.subr.mxu0 0.0
      %1165 = vmatpush1.msra.mxu0 0.0
      %1166 = vmatprep.subr.mxu0 0.0
      %1167 = vmatpush1.msra.mxu0 0.0
      %1168 = vmatprep.subr.mxu0 0.0
      %1169 = vmatpush1.msra.mxu0 0.0
      %1170 = vmatprep.subr.mxu0 0.0
      %1171 = vmatpush1.msra.mxu0 0.0
      %1172 = vmatprep.subr.mxu0 0.0
      %1173 = vmatpush1.msra.mxu0 0.0
      %1174 = vmatprep.subr.mxu0 0.0
      %1175 = vmatpush1.msra.mxu0 0.0
      %1176 = vmatprep.subr.mxu0 0.0
      %1177 = vmatpush1.msra.mxu0 0.0
      %1178 = vmatprep.subr.mxu0 0.0
      %1179 = vmatpush1.msra.mxu0 0.0
      %1180 = vmatprep.subr.mxu0 0.0
      %1181 = vmatpush1.msra.mxu0 0.0
      %1182 = vmatprep.subr.mxu0 0.0
      %1183 = vmatpush1.msra.mxu0 0.0
      %1184 = vmatprep.subr.mxu0 0.0
      %1185 = vmatpush1.msra.mxu0 0.0
      %1186 = vmatprep.subr.mxu0 0.0
      %1187 = vmatpush1.msra.mxu0 0.0
      %1188 = vmatprep.subr.mxu0 0.0
      %1189 = vmatpush1.msra.mxu0 0.0
      %1190 = vmatprep.subr.mxu0 0.0
      %1191 = vmatpush1.msra.mxu0 0.0
      %1192 = vmatprep.subr.mxu0 0.0
      %1193 = vmatpush1.msra.mxu0 0.0
      %1194 = vmatprep.subr.mxu0 0.0
      %1195 = vmatpush1.msra.mxu0 0.0
      %1196 = vmatprep.subr.mxu0 0.0
      %1197 = vmatpush1.msra.mxu0 0.0
      %1198 = vmatprep.subr.mxu0 0.0
      %1199 = vmatpush1.msra.mxu0 0.0
      %1200 = vmatprep.subr.mxu0 0.0
      %1201 = vmatpush1.msra.mxu0 0.0
      %1202 = vmatprep.subr.mxu0 0.0
      %1203 = vmatpush1.msra.mxu0 0.0
      %1204 = vmatprep.subr.mxu0 0.0
      %1205 = vmatpush1.msra.mxu0 0.0
      %1206 = vmatprep.subr.mxu0 0.0
      %1207 = vmatpush1.msra.mxu0 0.0
      %1208 = vmatprep.subr.mxu0 0.0
      %1209 = vmatpush1.msra.mxu0 0.0
      %1210 = vmatprep.subr.mxu0 0.0
      %1211 = vmatpush1.msra.mxu0 0.0
      %1212 = vmatprep.subr.mxu0 0.0
      %1213 = vmatpush1.msra.mxu0 0.0
      %1214 = vmatprep.subr.mxu0 0.0
      %1215 = vmatpush1.msra.mxu0 0.0
      %1216 = vmatprep.subr.mxu0 0.0
      %1217 = vmatpush1.msra.mxu0 0.0
      %1218 = vmatprep.subr.mxu0 0.0
      %1219 = vmatpush1.msra.mxu0 0.0
      %1220 = vmatprep.subr.mxu0 0.0
      %1221 = vmatpush1.msra.mxu0 0.0
      %1222 = vmatprep.mubr.f32.mxu0 0.0
      %1223 = vmatmul.mubr.f32.gmra.mrb[0].mxu0 %v1156
      %v1224 = vpop.f32.mrb[0].mxu0
      %v1225 = vadd.f32 0.0, %v1224
      %v1226 = vpop.f32.mrb[0].mxu0
      %v1227 = vadd.f32 0.0, %v1226
      %1228 = vdwg.mxu0
      %v1229 = vadd.f32 %v1129, %v1225
      %v1230 = vadd.f32 %v1130, %v1227
      %1231 = vrot.lane.b32.xlu0 %v554, 112
      %v1232 = vpop.permute.xlu0 %1231
      %1233 = vrot.lane.b32.xlu0 %v555, 112
      %v1234 = vpop.permute.xlu0 %1233
      %vm1235 = vcmp.lt.s32.totalorder %v561, 112
      %v1236 = vsel %vm1235, %v1232, %v1234
      %v1237 = vsel %vm1235, %v1234, %v1232
      %s1238 = scalar_lea.vmem %s9, 14
      %v1239 = vld [vmem:[%s1238] sm:$0x3]
      %v1241 = vlaneseq
      %v1242 = vshrl.u32 %v1241, 7
      %v1243 = vsub.s32 0, %v1242
      %v1244 = vrot.slane %v1239, %v1243
      %v1245 = vlaneseq
      %v1246 = vshrl.u32 %v1245, 7
      %v1247 = vsub.s32 1, %v1246
      %v1248 = vrot.slane %v1239, %v1247
      %v1251 = vmul.f32 %v1236, %v1244
      %v1252 = vmul.f32 %v1237, %v1248
      %s1253 = scalar_lea.vmem %s5, 56
      %v1254 = vld [vmem:[%s1253] sm:$0xff]
      %v1256 = vsel %vm604, %v1254, 0
      %1258 = vmatprep.subr.mxu0 %v1252
      %1259 = vmatpush1.msra.mxu0 %v1251
      %1260 = vmatprep.subr.mxu0 0.0
      %1261 = vmatpush1.msra.mxu0 0.0
      %1262 = vmatprep.subr.mxu0 0.0
      %1263 = vmatpush1.msra.mxu0 0.0
      %1264 = vmatprep.subr.mxu0 0.0
      %1265 = vmatpush1.msra.mxu0 0.0
      %1266 = vmatprep.subr.mxu0 0.0
      %1267 = vmatpush1.msra.mxu0 0.0
      %1268 = vmatprep.subr.mxu0 0.0
      %1269 = vmatpush1.msra.mxu0 0.0
      %1270 = vmatprep.subr.mxu0 0.0
      %1271 = vmatpush1.msra.mxu0 0.0
      %1272 = vmatprep.subr.mxu0 0.0
      %1273 = vmatpush1.msra.mxu0 0.0
      %1274 = vmatprep.subr.mxu0 0.0
      %1275 = vmatpush1.msra.mxu0 0.0
      %1276 = vmatprep.subr.mxu0 0.0
      %1277 = vmatpush1.msra.mxu0 0.0
      %1278 = vmatprep.subr.mxu0 0.0
      %1279 = vmatpush1.msra.mxu0 0.0
      %1280 = vmatprep.subr.mxu0 0.0
      %1281 = vmatpush1.msra.mxu0 0.0
      %1282 = vmatprep.subr.mxu0 0.0
      %1283 = vmatpush1.msra.mxu0 0.0
      %1284 = vmatprep.subr.mxu0 0.0
      %1285 = vmatpush1.msra.mxu0 0.0
      %1286 = vmatprep.subr.mxu0 0.0
      %1287 = vmatpush1.msra.mxu0 0.0
      %1288 = vmatprep.subr.mxu0 0.0
      %1289 = vmatpush1.msra.mxu0 0.0
      %1290 = vmatprep.subr.mxu0 0.0
      %1291 = vmatpush1.msra.mxu0 0.0
      %1292 = vmatprep.subr.mxu0 0.0
      %1293 = vmatpush1.msra.mxu0 0.0
      %1294 = vmatprep.subr.mxu0 0.0
      %1295 = vmatpush1.msra.mxu0 0.0
      %1296 = vmatprep.subr.mxu0 0.0
      %1297 = vmatpush1.msra.mxu0 0.0
      %1298 = vmatprep.subr.mxu0 0.0
      %1299 = vmatpush1.msra.mxu0 0.0
      %1300 = vmatprep.subr.mxu0 0.0
      %1301 = vmatpush1.msra.mxu0 0.0
      %1302 = vmatprep.subr.mxu0 0.0
      %1303 = vmatpush1.msra.mxu0 0.0
      %1304 = vmatprep.subr.mxu0 0.0
      %1305 = vmatpush1.msra.mxu0 0.0
      %1306 = vmatprep.subr.mxu0 0.0
      %1307 = vmatpush1.msra.mxu0 0.0
      %1308 = vmatprep.subr.mxu0 0.0
      %1309 = vmatpush1.msra.mxu0 0.0
      %1310 = vmatprep.subr.mxu0 0.0
      %1311 = vmatpush1.msra.mxu0 0.0
      %1312 = vmatprep.subr.mxu0 0.0
      %1313 = vmatpush1.msra.mxu0 0.0
      %1314 = vmatprep.subr.mxu0 0.0
      %1315 = vmatpush1.msra.mxu0 0.0
      %1316 = vmatprep.subr.mxu0 0.0
      %1317 = vmatpush1.msra.mxu0 0.0
      %1318 = vmatprep.subr.mxu0 0.0
      %1319 = vmatpush1.msra.mxu0 0.0
      %1320 = vmatprep.subr.mxu0 0.0
      %1321 = vmatpush1.msra.mxu0 0.0
      %1322 = vmatprep.mubr.f32.mxu0 0.0
      %1323 = vmatmul.mubr.f32.gmra.mrb[0].mxu0 %v1256
      %v1324 = vpop.f32.mrb[0].mxu0
      %v1325 = vadd.f32 0.0, %v1324
      %v1326 = vpop.f32.mrb[0].mxu0
      %v1327 = vadd.f32 0.0, %v1326
      %1328 = vdwg.mxu0
      %v1329 = vadd.f32 %v1229, %v1325
      %v1330 = vadd.f32 %v1230, %v1327
      %1331 = vrot.lane.b32.xlu0 %v554, 111
      %v1332 = vpop.permute.xlu0 %1331
      %1333 = vrot.lane.b32.xlu0 %v555, 111
      %v1334 = vpop.permute.xlu0 %1333
      %vm1335 = vcmp.lt.s32.totalorder %v561, 111
      %v1336 = vsel %vm1335, %v1332, %v1334
      %v1337 = vsel %vm1335, %v1334, %v1332
      %s1338 = scalar_lea.vmem %s9, 16
      %v1339 = vld [vmem:[%s1338] sm:$0x3]
      %v1341 = vlaneseq
      %v1342 = vshrl.u32 %v1341, 7
      %v1343 = vsub.s32 0, %v1342
      %v1344 = vrot.slane %v1339, %v1343
      %v1345 = vlaneseq
      %v1346 = vshrl.u32 %v1345, 7
      %v1347 = vsub.s32 1, %v1346
      %v1348 = vrot.slane %v1339, %v1347
      %v1351 = vmul.f32 %v1336, %v1344
      %v1352 = vmul.f32 %v1337, %v1348
      %s1353 = scalar_lea.vmem %s5, 64
      %v1354 = vld [vmem:[%s1353] sm:$0xff]
      %v1356 = vsel %vm604, %v1354, 0
      %1358 = vmatprep.subr.mxu0 %v1352
      %1359 = vmatpush1.msra.mxu0 %v1351
      %1360 = vmatprep.subr.mxu0 0.0
      %1361 = vmatpush1.msra.mxu0 0.0
      %1362 = vmatprep.subr.mxu0 0.0
      %1363 = vmatpush1.msra.mxu0 0.0
      %1364 = vmatprep.subr.mxu0 0.0
      %1365 = vmatpush1.msra.mxu0 0.0
      %1366 = vmatprep.subr.mxu0 0.0
      %1367 = vmatpush1.msra.mxu0 0.0
      %1368 = vmatprep.subr.mxu0 0.0
      %1369 = vmatpush1.msra.mxu0 0.0
      %1370 = vmatprep.subr.mxu0 0.0
      %1371 = vmatpush1.msra.mxu0 0.0
      %1372 = vmatprep.subr.mxu0 0.0
      %1373 = vmatpush1.msra.mxu0 0.0
      %1374 = vmatprep.subr.mxu0 0.0
      %1375 = vmatpush1.msra.mxu0 0.0
      %1376 = vmatprep.subr.mxu0 0.0
      %1377 = vmatpush1.msra.mxu0 0.0
      %1378 = vmatprep.subr.mxu0 0.0
      %1379 = vmatpush1.msra.mxu0 0.0
      %1380 = vmatprep.subr.mxu0 0.0
      %1381 = vmatpush1.msra.mxu0 0.0
      %1382 = vmatprep.subr.mxu0 0.0
      %1383 = vmatpush1.msra.mxu0 0.0
      %1384 = vmatprep.subr.mxu0 0.0
      %1385 = vmatpush1.msra.mxu0 0.0
      %1386 = vmatprep.subr.mxu0 0.0
      %1387 = vmatpush1.msra.mxu0 0.0
      %1388 = vmatprep.subr.mxu0 0.0
      %1389 = vmatpush1.msra.mxu0 0.0
      %1390 = vmatprep.subr.mxu0 0.0
      %1391 = vmatpush1.msra.mxu0 0.0
      %1392 = vmatprep.subr.mxu0 0.0
      %1393 = vmatpush1.msra.mxu0 0.0
      %1394 = vmatprep.subr.mxu0 0.0
      %1395 = vmatpush1.msra.mxu0 0.0
      %1396 = vmatprep.subr.mxu0 0.0
      %1397 = vmatpush1.msra.mxu0 0.0
      %1398 = vmatprep.subr.mxu0 0.0
      %1399 = vmatpush1.msra.mxu0 0.0
      %1400 = vmatprep.subr.mxu0 0.0
      %1401 = vmatpush1.msra.mxu0 0.0
      %1402 = vmatprep.subr.mxu0 0.0
      %1403 = vmatpush1.msra.mxu0 0.0
      %1404 = vmatprep.subr.mxu0 0.0
      %1405 = vmatpush1.msra.mxu0 0.0
      %1406 = vmatprep.subr.mxu0 0.0
      %1407 = vmatpush1.msra.mxu0 0.0
      %1408 = vmatprep.subr.mxu0 0.0
      %1409 = vmatpush1.msra.mxu0 0.0
      %1410 = vmatprep.subr.mxu0 0.0
      %1411 = vmatpush1.msra.mxu0 0.0
      %1412 = vmatprep.subr.mxu0 0.0
      %1413 = vmatpush1.msra.mxu0 0.0
      %1414 = vmatprep.subr.mxu0 0.0
      %1415 = vmatpush1.msra.mxu0 0.0
      %1416 = vmatprep.subr.mxu0 0.0
      %1417 = vmatpush1.msra.mxu0 0.0
      %1418 = vmatprep.subr.mxu0 0.0
      %1419 = vmatpush1.msra.mxu0 0.0
      %1420 = vmatprep.subr.mxu0 0.0
      %1421 = vmatpush1.msra.mxu0 0.0
      %1422 = vmatprep.mubr.f32.mxu0 0.0
      %1423 = vmatmul.mubr.f32.gmra.mrb[0].mxu0 %v1356
      %v1424 = vpop.f32.mrb[0].mxu0
      %v1425 = vadd.f32 0.0, %v1424
      %v1426 = vpop.f32.mrb[0].mxu0
      %v1427 = vadd.f32 0.0, %v1426
      %1428 = vdwg.mxu0
      %v1429 = vadd.f32 %v1329, %v1425
      %v1430 = vadd.f32 %v1330, %v1427
      %v1431 = vld [vmem:[%s6] sm:$0xff]
      %1433 = vset.pattern.permute.xlu0 0
      %1434 = vperm.xlu0 %1433, %v1431
      %v1435 = vpop.permute.xlu0 %1434
      %v1437 = vadd.f32 %v1429, %v1435
      %v1438 = vadd.f32 %v1430, %v1435
      %v1439 = vmax.f32 %v1437, 0.0
      %v1440 = vmax.f32 %v1438, 0.0
      %1441 = vrot.lane.b32.xlu0 %v1439, 17
      %v1442 = vpop.permute.xlu0 %1441
      %1443 = vrot.lane.b32.xlu0 %v1440, 17
      %v1444 = vpop.permute.xlu0 %1443
      %v1445 = vsel %vm562, %v1442, %v1444
      %v1446 = vsel %vm562, %v1444, %v1442
      %v1447 = vmul.f32 %v1446, %v570
      %v1448 = vmul.f32 %v1445, %v574
      %v1449 = vld [vmem:[%s7] sm:$0xff]
      %v1450 = vld [vmem:[%s7 + $0x8] sm:$0xff]
      %v1451 = vld [vmem:[%s7 + $0x10] sm:$0xff]
      %v1452 = vld [vmem:[%s7 + $0x18] sm:$0xff]
      %1453 = vrot.lane.b32.xlu0 %v1439, 16
      %v1454 = vpop.permute.xlu0 %1453
      %1455 = vrot.lane.b32.xlu0 %v1440, 16
      %v1456 = vpop.permute.xlu0 %1455
      %v1457 = vsel %vm584, %v1454, %v1456
      %v1458 = vsel %vm584, %v1456, %v1454
      %v1459 = vmul.f32 %v1458, %v593
      %v1460 = vmul.f32 %v1457, %v597
      %s1461 = scalar_lea.vmem %s7, 32
      %v1462 = vld [vmem:[%s1461] sm:$0xff]
      %v1463 = vld [vmem:[%s1461 + $0x8] sm:$0xff]
      %v1464 = vld [vmem:[%s1461 + $0x10] sm:$0xff]
      %v1465 = vld [vmem:[%s1461 + $0x18] sm:$0xff]
      %v1467 = vsel %vm604, %v1462, 0
      %v1470 = vsel %vm604, %v1463, 0
      %v1473 = vsel %vm604, %v1464, 0
      %v1476 = vsel %vm604, %v1465, 0
      %1478 = vmatprep.subr.mxu0 %v1460
      %1479 = vmatpush1.msra.mxu0 %v1459
      %1480 = vmatprep.subr.mxu0 0.0
      %1481 = vmatpush1.msra.mxu0 0.0
      %1482 = vmatprep.subr.mxu0 0.0
      %1483 = vmatpush1.msra.mxu0 0.0
      %1484 = vmatprep.subr.mxu0 0.0
      %1485 = vmatpush1.msra.mxu0 0.0
      %1486 = vmatprep.subr.mxu0 0.0
      %1487 = vmatpush1.msra.mxu0 0.0
      %1488 = vmatprep.subr.mxu0 0.0
      %1489 = vmatpush1.msra.mxu0 0.0
      %1490 = vmatprep.subr.mxu0 0.0
      %1491 = vmatpush1.msra.mxu0 0.0
      %1492 = vmatprep.subr.mxu0 0.0
      %1493 = vmatpush1.msra.mxu0 0.0
      %1494 = vmatprep.subr.mxu0 0.0
      %1495 = vmatpush1.msra.mxu0 0.0
      %1496 = vmatprep.subr.mxu0 0.0
      %1497 = vmatpush1.msra.mxu0 0.0
      %1498 = vmatprep.subr.mxu0 0.0
      %1499 = vmatpush1.msra.mxu0 0.0
      %1500 = vmatprep.subr.mxu0 0.0
      %1501 = vmatpush1.msra.mxu0 0.0
      %1502 = vmatprep.subr.mxu0 0.0
      %1503 = vmatpush1.msra.mxu0 0.0
      %1504 = vmatprep.subr.mxu0 0.0
      %1505 = vmatpush1.msra.mxu0 0.0
      %1506 = vmatprep.subr.mxu0 0.0
      %1507 = vmatpush1.msra.mxu0 0.0
      %1508 = vmatprep.subr.mxu0 0.0
      %1509 = vmatpush1.msra.mxu0 0.0
      %1510 = vmatprep.subr.mxu0 0.0
      %1511 = vmatpush1.msra.mxu0 0.0
      %1512 = vmatprep.subr.mxu0 0.0
      %1513 = vmatpush1.msra.mxu0 0.0
      %1514 = vmatprep.subr.mxu0 0.0
      %1515 = vmatpush1.msra.mxu0 0.0
      %1516 = vmatprep.subr.mxu0 0.0
      %1517 = vmatpush1.msra.mxu0 0.0
      %1518 = vmatprep.subr.mxu0 0.0
      %1519 = vmatpush1.msra.mxu0 0.0
      %1520 = vmatprep.subr.mxu0 0.0
      %1521 = vmatpush1.msra.mxu0 0.0
      %1522 = vmatprep.subr.mxu0 0.0
      %1523 = vmatpush1.msra.mxu0 0.0
      %1524 = vmatprep.subr.mxu0 0.0
      %1525 = vmatpush1.msra.mxu0 0.0
      %1526 = vmatprep.subr.mxu0 0.0
      %1527 = vmatpush1.msra.mxu0 0.0
      %1528 = vmatprep.subr.mxu0 0.0
      %1529 = vmatpush1.msra.mxu0 0.0
      %1530 = vmatprep.subr.mxu0 0.0
      %1531 = vmatpush1.msra.mxu0 0.0
      %1532 = vmatprep.subr.mxu0 0.0
      %1533 = vmatpush1.msra.mxu0 0.0
      %1534 = vmatprep.subr.mxu0 0.0
      %1535 = vmatpush1.msra.mxu0 0.0
      %1536 = vmatprep.subr.mxu0 0.0
      %1537 = vmatpush1.msra.mxu0 0.0
      %1538 = vmatprep.subr.mxu0 0.0
      %1539 = vmatpush1.msra.mxu0 0.0
      %1540 = vmatprep.subr.mxu0 0.0
      %1541 = vmatpush1.msra.mxu0 0.0
      %1542 = vmatprep.mubr.f32.mxu0 0.0
      %1543 = vmatmul.mubr.f32.gmra.mrb[0].mxu0 %v1467
      %v1544 = vpop.f32.mrb[0].mxu0
      %v1545 = vadd.f32 0.0, %v1544
      %v1546 = vpop.f32.mrb[0].mxu0
      %v1547 = vadd.f32 0.0, %v1546
      %1548 = vmatprep.mubr.f32.mxu0 0.0
      %1549 = vmatmul.mubr.f32.gmra.mrb[0].mxu0 %v1470
      %v1550 = vpop.f32.mrb[0].mxu0
      %v1551 = vadd.f32 0.0, %v1550
      %v1552 = vpop.f32.mrb[0].mxu0
      %v1553 = vadd.f32 0.0, %v1552
      %1554 = vmatprep.mubr.f32.mxu0 0.0
      %1555 = vmatmul.mubr.f32.gmra.mrb[0].mxu0 %v1473
      %v1556 = vpop.f32.mrb[0].mxu0
      %v1557 = vadd.f32 0.0, %v1556
      %v1558 = vpop.f32.mrb[0].mxu0
      %v1559 = vadd.f32 0.0, %v1558
      %1560 = vmatprep.mubr.f32.mxu0 0.0
      %1561 = vmatmul.mubr.f32.gmra.mrb[0].mxu0 %v1476
      %v1562 = vpop.f32.mrb[0].mxu0
      %v1563 = vadd.f32 0.0, %v1562
      %v1564 = vpop.f32.mrb[0].mxu0
      %v1565 = vadd.f32 0.0, %v1564
      %1566 = vdwg.mxu0
      %v1568 = vsel %vm604, %v1449, 0
      %v1571 = vsel %vm604, %v1450, 0
      %v1574 = vsel %vm604, %v1451, 0
      %v1577 = vsel %vm604, %v1452, 0
      %1579 = vmatprep.subr.mxu0 %v1448
      %1580 = vmatpush1.msra.mxu0 %v1447
      %1581 = vmatprep.subr.mxu0 0.0
      %1582 = vmatpush1.msra.mxu0 0.0
      %1583 = vmatprep.subr.mxu0 0.0
      %1584 = vmatpush1.msra.mxu0 0.0
      %1585 = vmatprep.subr.mxu0 0.0
      %1586 = vmatpush1.msra.mxu0 0.0
      %1587 = vmatprep.subr.mxu0 0.0
      %1588 = vmatpush1.msra.mxu0 0.0
      %1589 = vmatprep.subr.mxu0 0.0
      %1590 = vmatpush1.msra.mxu0 0.0
      %1591 = vmatprep.subr.mxu0 0.0
      %1592 = vmatpush1.msra.mxu0 0.0
      %1593 = vmatprep.subr.mxu0 0.0
      %1594 = vmatpush1.msra.mxu0 0.0
      %1595 = vmatprep.subr.mxu0 0.0
      %1596 = vmatpush1.msra.mxu0 0.0
      %1597 = vmatprep.subr.mxu0 0.0
      %1598 = vmatpush1.msra.mxu0 0.0
      %1599 = vmatprep.subr.mxu0 0.0
      %1600 = vmatpush1.msra.mxu0 0.0
      %1601 = vmatprep.subr.mxu0 0.0
      %1602 = vmatpush1.msra.mxu0 0.0
      %1603 = vmatprep.subr.mxu0 0.0
      %1604 = vmatpush1.msra.mxu0 0.0
      %1605 = vmatprep.subr.mxu0 0.0
      %1606 = vmatpush1.msra.mxu0 0.0
      %1607 = vmatprep.subr.mxu0 0.0
      %1608 = vmatpush1.msra.mxu0 0.0
      %1609 = vmatprep.subr.mxu0 0.0
      %1610 = vmatpush1.msra.mxu0 0.0
      %1611 = vmatprep.subr.mxu0 0.0
      %1612 = vmatpush1.msra.mxu0 0.0
      %1613 = vmatprep.subr.mxu0 0.0
      %1614 = vmatpush1.msra.mxu0 0.0
      %1615 = vmatprep.subr.mxu0 0.0
      %1616 = vmatpush1.msra.mxu0 0.0
      %1617 = vmatprep.subr.mxu0 0.0
      %1618 = vmatpush1.msra.mxu0 0.0
      %1619 = vmatprep.subr.mxu0 0.0
      %1620 = vmatpush1.msra.mxu0 0.0
      %1621 = vmatprep.subr.mxu0 0.0
      %1622 = vmatpush1.msra.mxu0 0.0
      %1623 = vmatprep.subr.mxu0 0.0
      %1624 = vmatpush1.msra.mxu0 0.0
      %1625 = vmatprep.subr.mxu0 0.0
      %1626 = vmatpush1.msra.mxu0 0.0
      %1627 = vmatprep.subr.mxu0 0.0
      %1628 = vmatpush1.msra.mxu0 0.0
      %1629 = vmatprep.subr.mxu0 0.0
      %1630 = vmatpush1.msra.mxu0 0.0
      %1631 = vmatprep.subr.mxu0 0.0
      %1632 = vmatpush1.msra.mxu0 0.0
      %1633 = vmatprep.subr.mxu0 0.0
      %1634 = vmatpush1.msra.mxu0 0.0
      %1635 = vmatprep.subr.mxu0 0.0
      %1636 = vmatpush1.msra.mxu0 0.0
      %1637 = vmatprep.subr.mxu0 0.0
      %1638 = vmatpush1.msra.mxu0 0.0
      %1639 = vmatprep.subr.mxu0 0.0
      %1640 = vmatpush1.msra.mxu0 0.0
      %1641 = vmatprep.subr.mxu0 0.0
      %1642 = vmatpush1.msra.mxu0 0.0
      %1643 = vmatprep.mubr.f32.mxu0 0.0
      %1644 = vmatmul.mubr.f32.gmra.mrb[0].mxu0 %v1568
      %v1645 = vpop.f32.mrb[0].mxu0
      %v1646 = vadd.f32 %v1545, %v1645
      %v1647 = vpop.f32.mrb[0].mxu0
      %v1648 = vadd.f32 %v1547, %v1647
      %1649 = vmatprep.mubr.f32.mxu0 0.0
      %1650 = vmatmul.mubr.f32.gmra.mrb[0].mxu0 %v1571
      %v1651 = vpop.f32.mrb[0].mxu0
      %v1652 = vadd.f32 %v1551, %v1651
      %v1653 = vpop.f32.mrb[0].mxu0
      %v1654 = vadd.f32 %v1553, %v1653
      %1655 = vmatprep.mubr.f32.mxu0 0.0
      %1656 = vmatmul.mubr.f32.gmra.mrb[0].mxu0 %v1574
      %v1657 = vpop.f32.mrb[0].mxu0
      %v1658 = vadd.f32 %v1557, %v1657
      %v1659 = vpop.f32.mrb[0].mxu0
      %v1660 = vadd.f32 %v1559, %v1659
      %1661 = vmatprep.mubr.f32.mxu0 0.0
      %1662 = vmatmul.mubr.f32.gmra.mrb[0].mxu0 %v1577
      %v1663 = vpop.f32.mrb[0].mxu0
      %v1664 = vadd.f32 %v1563, %v1663
      %v1665 = vpop.f32.mrb[0].mxu0
      %v1666 = vadd.f32 %v1565, %v1665
      %1667 = vdwg.mxu0
      %1668 = vrot.lane.b32.xlu0 %v1439, 15
      %v1669 = vpop.permute.xlu0 %1668
      %1670 = vrot.lane.b32.xlu0 %v1440, 15
      %v1671 = vpop.permute.xlu0 %1670
      %v1672 = vsel %vm757, %v1669, %v1671
      %v1673 = vsel %vm757, %v1671, %v1669
      %v1674 = vmul.f32 %v1673, %v766
      %v1675 = vmul.f32 %v1672, %v770
      %s1676 = scalar_lea.vmem %s7, 64
      %v1677 = vld [vmem:[%s1676] sm:$0xff]
      %v1678 = vld [vmem:[%s1676 + $0x8] sm:$0xff]
      %v1679 = vld [vmem:[%s1676 + $0x10] sm:$0xff]
      %v1680 = vld [vmem:[%s1676 + $0x18] sm:$0xff]
      %v1682 = vsel %vm604, %v1677, 0
      %v1685 = vsel %vm604, %v1678, 0
      %v1688 = vsel %vm604, %v1679, 0
      %v1691 = vsel %vm604, %v1680, 0
      %1693 = vmatprep.subr.mxu0 %v1675
      %1694 = vmatpush1.msra.mxu0 %v1674
      %1695 = vmatprep.subr.mxu0 0.0
      %1696 = vmatpush1.msra.mxu0 0.0
      %1697 = vmatprep.subr.mxu0 0.0
      %1698 = vmatpush1.msra.mxu0 0.0
      %1699 = vmatprep.subr.mxu0 0.0
      %1700 = vmatpush1.msra.mxu0 0.0
      %1701 = vmatprep.subr.mxu0 0.0
      %1702 = vmatpush1.msra.mxu0 0.0
      %1703 = vmatprep.subr.mxu0 0.0
      %1704 = vmatpush1.msra.mxu0 0.0
      %1705 = vmatprep.subr.mxu0 0.0
      %1706 = vmatpush1.msra.mxu0 0.0
      %1707 = vmatprep.subr.mxu0 0.0
      %1708 = vmatpush1.msra.mxu0 0.0
      %1709 = vmatprep.subr.mxu0 0.0
      %1710 = vmatpush1.msra.mxu0 0.0
      %1711 = vmatprep.subr.mxu0 0.0
      %1712 = vmatpush1.msra.mxu0 0.0
      %1713 = vmatprep.subr.mxu0 0.0
      %1714 = vmatpush1.msra.mxu0 0.0
      %1715 = vmatprep.subr.mxu0 0.0
      %1716 = vmatpush1.msra.mxu0 0.0
      %1717 = vmatprep.subr.mxu0 0.0
      %1718 = vmatpush1.msra.mxu0 0.0
      %1719 = vmatprep.subr.mxu0 0.0
      %1720 = vmatpush1.msra.mxu0 0.0
      %1721 = vmatprep.subr.mxu0 0.0
      %1722 = vmatpush1.msra.mxu0 0.0
      %1723 = vmatprep.subr.mxu0 0.0
      %1724 = vmatpush1.msra.mxu0 0.0
      %1725 = vmatprep.subr.mxu0 0.0
      %1726 = vmatpush1.msra.mxu0 0.0
      %1727 = vmatprep.subr.mxu0 0.0
      %1728 = vmatpush1.msra.mxu0 0.0
      %1729 = vmatprep.subr.mxu0 0.0
      %1730 = vmatpush1.msra.mxu0 0.0
      %1731 = vmatprep.subr.mxu0 0.0
      %1732 = vmatpush1.msra.mxu0 0.0
      %1733 = vmatprep.subr.mxu0 0.0
      %1734 = vmatpush1.msra.mxu0 0.0
      %1735 = vmatprep.subr.mxu0 0.0
      %1736 = vmatpush1.msra.mxu0 0.0
      %1737 = vmatprep.subr.mxu0 0.0
      %1738 = vmatpush1.msra.mxu0 0.0
      %1739 = vmatprep.subr.mxu0 0.0
      %1740 = vmatpush1.msra.mxu0 0.0
      %1741 = vmatprep.subr.mxu0 0.0
      %1742 = vmatpush1.msra.mxu0 0.0
      %1743 = vmatprep.subr.mxu0 0.0
      %1744 = vmatpush1.msra.mxu0 0.0
      %1745 = vmatprep.subr.mxu0 0.0
      %1746 = vmatpush1.msra.mxu0 0.0
      %1747 = vmatprep.subr.mxu0 0.0
      %1748 = vmatpush1.msra.mxu0 0.0
      %1749 = vmatprep.subr.mxu0 0.0
      %1750 = vmatpush1.msra.mxu0 0.0
      %1751 = vmatprep.subr.mxu0 0.0
      %1752 = vmatpush1.msra.mxu0 0.0
      %1753 = vmatprep.subr.mxu0 0.0
      %1754 = vmatpush1.msra.mxu0 0.0
      %1755 = vmatprep.subr.mxu0 0.0
      %1756 = vmatpush1.msra.mxu0 0.0
      %1757 = vmatprep.mubr.f32.mxu0 0.0
      %1758 = vmatmul.mubr.f32.gmra.mrb[0].mxu0 %v1682
      %v1759 = vpop.f32.mrb[0].mxu0
      %v1760 = vadd.f32 0.0, %v1759
      %v1761 = vpop.f32.mrb[0].mxu0
      %v1762 = vadd.f32 0.0, %v1761
      %1763 = vmatprep.mubr.f32.mxu0 0.0
      %1764 = vmatmul.mubr.f32.gmra.mrb[0].mxu0 %v1685
      %v1765 = vpop.f32.mrb[0].mxu0
      %v1766 = vadd.f32 0.0, %v1765
      %v1767 = vpop.f32.mrb[0].mxu0
      %v1768 = vadd.f32 0.0, %v1767
      %1769 = vmatprep.mubr.f32.mxu0 0.0
      %1770 = vmatmul.mubr.f32.gmra.mrb[0].mxu0 %v1688
      %v1771 = vpop.f32.mrb[0].mxu0
      %v1772 = vadd.f32 0.0, %v1771
      %v1773 = vpop.f32.mrb[0].mxu0
      %v1774 = vadd.f32 0.0, %v1773
      %1775 = vmatprep.mubr.f32.mxu0 0.0
      %1776 = vmatmul.mubr.f32.gmra.mrb[0].mxu0 %v1691
      %v1777 = vpop.f32.mrb[0].mxu0
      %v1778 = vadd.f32 0.0, %v1777
      %v1779 = vpop.f32.mrb[0].mxu0
      %v1780 = vadd.f32 0.0, %v1779
      %1781 = vdwg.mxu0
      %v1782 = vadd.f32 %v1646, %v1760
      %v1783 = vadd.f32 %v1648, %v1762
      %v1784 = vadd.f32 %v1652, %v1766
      %v1785 = vadd.f32 %v1654, %v1768
      %v1786 = vadd.f32 %v1658, %v1772
      %v1787 = vadd.f32 %v1660, %v1774
      %v1788 = vadd.f32 %v1664, %v1778
      %v1789 = vadd.f32 %v1666, %v1780
      %1790 = vrot.lane.b32.xlu0 %v1439, 1
      %v1791 = vpop.permute.xlu0 %1790
      %1792 = vrot.lane.b32.xlu0 %v1440, 1
      %v1793 = vpop.permute.xlu0 %1792
      %v1794 = vsel %vm857, %v1791, %v1793
      %v1795 = vsel %vm857, %v1793, %v1791
      %v1796 = vmul.f32 %v1795, %v866
      %v1797 = vmul.f32 %v1794, %v870
      %s1798 = scalar_lea.vmem %s7, 96
      %v1799 = vld [vmem:[%s1798] sm:$0xff]
      %v1800 = vld [vmem:[%s1798 + $0x8] sm:$0xff]
      %v1801 = vld [vmem:[%s1798 + $0x10] sm:$0xff]
      %v1802 = vld [vmem:[%s1798 + $0x18] sm:$0xff]
      %v1804 = vsel %vm604, %v1799, 0
      %v1807 = vsel %vm604, %v1800, 0
      %v1810 = vsel %vm604, %v1801, 0
      %v1813 = vsel %vm604, %v1802, 0
      %1815 = vmatprep.subr.mxu0 %v1797
      %1816 = vmatpush1.msra.mxu0 %v1796
      %1817 = vmatprep.subr.mxu0 0.0
      %1818 = vmatpush1.msra.mxu0 0.0
      %1819 = vmatprep.subr.mxu0 0.0
      %1820 = vmatpush1.msra.mxu0 0.0
      %1821 = vmatprep.subr.mxu0 0.0
      %1822 = vmatpush1.msra.mxu0 0.0
      %1823 = vmatprep.subr.mxu0 0.0
      %1824 = vmatpush1.msra.mxu0 0.0
      %1825 = vmatprep.subr.mxu0 0.0
      %1826 = vmatpush1.msra.mxu0 0.0
      %1827 = vmatprep.subr.mxu0 0.0
      %1828 = vmatpush1.msra.mxu0 0.0
      %1829 = vmatprep.subr.mxu0 0.0
      %1830 = vmatpush1.msra.mxu0 0.0
      %1831 = vmatprep.subr.mxu0 0.0
      %1832 = vmatpush1.msra.mxu0 0.0
      %1833 = vmatprep.subr.mxu0 0.0
      %1834 = vmatpush1.msra.mxu0 0.0
      %1835 = vmatprep.subr.mxu0 0.0
      %1836 = vmatpush1.msra.mxu0 0.0
      %1837 = vmatprep.subr.mxu0 0.0
      %1838 = vmatpush1.msra.mxu0 0.0
      %1839 = vmatprep.subr.mxu0 0.0
      %1840 = vmatpush1.msra.mxu0 0.0
      %1841 = vmatprep.subr.mxu0 0.0
      %1842 = vmatpush1.msra.mxu0 0.0
      %1843 = vmatprep.subr.mxu0 0.0
      %1844 = vmatpush1.msra.mxu0 0.0
      %1845 = vmatprep.subr.mxu0 0.0
      %1846 = vmatpush1.msra.mxu0 0.0
      %1847 = vmatprep.subr.mxu0 0.0
      %1848 = vmatpush1.msra.mxu0 0.0
      %1849 = vmatprep.subr.mxu0 0.0
      %1850 = vmatpush1.msra.mxu0 0.0
      %1851 = vmatprep.subr.mxu0 0.0
      %1852 = vmatpush1.msra.mxu0 0.0
      %1853 = vmatprep.subr.mxu0 0.0
      %1854 = vmatpush1.msra.mxu0 0.0
      %1855 = vmatprep.subr.mxu0 0.0
      %1856 = vmatpush1.msra.mxu0 0.0
      %1857 = vmatprep.subr.mxu0 0.0
      %1858 = vmatpush1.msra.mxu0 0.0
      %1859 = vmatprep.subr.mxu0 0.0
      %1860 = vmatpush1.msra.mxu0 0.0
      %1861 = vmatprep.subr.mxu0 0.0
      %1862 = vmatpush1.msra.mxu0 0.0
      %1863 = vmatprep.subr.mxu0 0.0
      %1864 = vmatpush1.msra.mxu0 0.0
      %1865 = vmatprep.subr.mxu0 0.0
      %1866 = vmatpush1.msra.mxu0 0.0
      %1867 = vmatprep.subr.mxu0 0.0
      %1868 = vmatpush1.msra.mxu0 0.0
      %1869 = vmatprep.subr.mxu0 0.0
      %1870 = vmatpush1.msra.mxu0 0.0
      %1871 = vmatprep.subr.mxu0 0.0
      %1872 = vmatpush1.msra.mxu0 0.0
      %1873 = vmatprep.subr.mxu0 0.0
      %1874 = vmatpush1.msra.mxu0 0.0
      %1875 = vmatprep.subr.mxu0 0.0
      %1876 = vmatpush1.msra.mxu0 0.0
      %1877 = vmatprep.subr.mxu0 0.0
      %1878 = vmatpush1.msra.mxu0 0.0
      %1879 = vmatprep.mubr.f32.mxu0 0.0
      %1880 = vmatmul.mubr.f32.gmra.mrb[0].mxu0 %v1804
      %v1881 = vpop.f32.mrb[0].mxu0
      %v1882 = vadd.f32 0.0, %v1881
      %v1883 = vpop.f32.mrb[0].mxu0
      %v1884 = vadd.f32 0.0, %v1883
      %1885 = vmatprep.mubr.f32.mxu0 0.0
      %1886 = vmatmul.mubr.f32.gmra.mrb[0].mxu0 %v1807
      %v1887 = vpop.f32.mrb[0].mxu0
      %v1888 = vadd.f32 0.0, %v1887
      %v1889 = vpop.f32.mrb[0].mxu0
      %v1890 = vadd.f32 0.0, %v1889
      %1891 = vmatprep.mubr.f32.mxu0 0.0
      %1892 = vmatmul.mubr.f32.gmra.mrb[0].mxu0 %v1810
      %v1893 = vpop.f32.mrb[0].mxu0
      %v1894 = vadd.f32 0.0, %v1893
      %v1895 = vpop.f32.mrb[0].mxu0
      %v1896 = vadd.f32 0.0, %v1895
      %1897 = vmatprep.mubr.f32.mxu0 0.0
      %1898 = vmatmul.mubr.f32.gmra.mrb[0].mxu0 %v1813
      %v1899 = vpop.f32.mrb[0].mxu0
      %v1900 = vadd.f32 0.0, %v1899
      %v1901 = vpop.f32.mrb[0].mxu0
      %v1902 = vadd.f32 0.0, %v1901
      %1903 = vdwg.mxu0
      %v1904 = vadd.f32 %v1782, %v1882
      %v1905 = vadd.f32 %v1783, %v1884
      %v1906 = vadd.f32 %v1784, %v1888
      %v1907 = vadd.f32 %v1785, %v1890
      %v1908 = vadd.f32 %v1786, %v1894
      %v1909 = vadd.f32 %v1787, %v1896
      %v1910 = vadd.f32 %v1788, %v1900
      %v1911 = vadd.f32 %v1789, %v1902
      %s1912 = scalar_lea.vmem %s7, 128
      %v1913 = vld [vmem:[%s1912] sm:$0xff]
      %v1914 = vld [vmem:[%s1912 + $0x8] sm:$0xff]
      %v1915 = vld [vmem:[%s1912 + $0x10] sm:$0xff]
      %v1916 = vld [vmem:[%s1912 + $0x18] sm:$0xff]
      %v1918 = vsel %vm604, %v1913, 0
      %v1921 = vsel %vm604, %v1914, 0
      %v1924 = vsel %vm604, %v1915, 0
      %v1927 = vsel %vm604, %v1916, 0
      %1929 = vmatprep.subr.mxu0 %v1440
      %1930 = vmatpush1.msra.mxu0 %v1439
      %1931 = vmatprep.subr.mxu0 0.0
      %1932 = vmatpush1.msra.mxu0 0.0
      %1933 = vmatprep.subr.mxu0 0.0
      %1934 = vmatpush1.msra.mxu0 0.0
      %1935 = vmatprep.subr.mxu0 0.0
      %1936 = vmatpush1.msra.mxu0 0.0
      %1937 = vmatprep.subr.mxu0 0.0
      %1938 = vmatpush1.msra.mxu0 0.0
      %1939 = vmatprep.subr.mxu0 0.0
      %1940 = vmatpush1.msra.mxu0 0.0
      %1941 = vmatprep.subr.mxu0 0.0
      %1942 = vmatpush1.msra.mxu0 0.0
      %1943 = vmatprep.subr.mxu0 0.0
      %1944 = vmatpush1.msra.mxu0 0.0
      %1945 = vmatprep.subr.mxu0 0.0
      %1946 = vmatpush1.msra.mxu0 0.0
      %1947 = vmatprep.subr.mxu0 0.0
      %1948 = vmatpush1.msra.mxu0 0.0
      %1949 = vmatprep.subr.mxu0 0.0
      %1950 = vmatpush1.msra.mxu0 0.0
      %1951 = vmatprep.subr.mxu0 0.0
      %1952 = vmatpush1.msra.mxu0 0.0
      %1953 = vmatprep.subr.mxu0 0.0
      %1954 = vmatpush1.msra.mxu0 0.0
      %1955 = vmatprep.subr.mxu0 0.0
      %1956 = vmatpush1.msra.mxu0 0.0
      %1957 = vmatprep.subr.mxu0 0.0
      %1958 = vmatpush1.msra.mxu0 0.0
      %1959 = vmatprep.subr.mxu0 0.0
      %1960 = vmatpush1.msra.mxu0 0.0
      %1961 = vmatprep.subr.mxu0 0.0
      %1962 = vmatpush1.msra.mxu0 0.0
      %1963 = vmatprep.subr.mxu0 0.0
      %1964 = vmatpush1.msra.mxu0 0.0
      %1965 = vmatprep.subr.mxu0 0.0
      %1966 = vmatpush1.msra.mxu0 0.0
      %1967 = vmatprep.subr.mxu0 0.0
      %1968 = vmatpush1.msra.mxu0 0.0
      %1969 = vmatprep.subr.mxu0 0.0
      %1970 = vmatpush1.msra.mxu0 0.0
      %1971 = vmatprep.subr.mxu0 0.0
      %1972 = vmatpush1.msra.mxu0 0.0
      %1973 = vmatprep.subr.mxu0 0.0
      %1974 = vmatpush1.msra.mxu0 0.0
      %1975 = vmatprep.subr.mxu0 0.0
      %1976 = vmatpush1.msra.mxu0 0.0
      %1977 = vmatprep.subr.mxu0 0.0
      %1978 = vmatpush1.msra.mxu0 0.0
      %1979 = vmatprep.subr.mxu0 0.0
      %1980 = vmatpush1.msra.mxu0 0.0
      %1981 = vmatprep.subr.mxu0 0.0
      %1982 = vmatpush1.msra.mxu0 0.0
      %1983 = vmatprep.subr.mxu0 0.0
      %1984 = vmatpush1.msra.mxu0 0.0
      %1985 = vmatprep.subr.mxu0 0.0
      %1986 = vmatpush1.msra.mxu0 0.0
      %1987 = vmatprep.subr.mxu0 0.0
      %1988 = vmatpush1.msra.mxu0 0.0
      %1989 = vmatprep.subr.mxu0 0.0
      %1990 = vmatpush1.msra.mxu0 0.0
      %1991 = vmatprep.subr.mxu0 0.0
      %1992 = vmatpush1.msra.mxu0 0.0
      %1993 = vmatprep.mubr.f32.mxu0 0.0
      %1994 = vmatmul.mubr.f32.gmra.mrb[0].mxu0 %v1918
      %v1995 = vpop.f32.mrb[0].mxu0
      %v1996 = vadd.f32 0.0, %v1995
      %v1997 = vpop.f32.mrb[0].mxu0
      %v1998 = vadd.f32 0.0, %v1997
      %1999 = vmatprep.mubr.f32.mxu0 0.0
      %2000 = vmatmul.mubr.f32.gmra.mrb[0].mxu0 %v1921
      %v2001 = vpop.f32.mrb[0].mxu0
      %v2002 = vadd.f32 0.0, %v2001
      %v2003 = vpop.f32.mrb[0].mxu0
      %v2004 = vadd.f32 0.0, %v2003
      %2005 = vmatprep.mubr.f32.mxu0 0.0
      %2006 = vmatmul.mubr.f32.gmra.mrb[0].mxu0 %v1924
      %v2007 = vpop.f32.mrb[0].mxu0
      %v2008 = vadd.f32 0.0, %v2007
      %v2009 = vpop.f32.mrb[0].mxu0
      %v2010 = vadd.f32 0.0, %v2009
      %2011 = vmatprep.mubr.f32.mxu0 0.0
      %2012 = vmatmul.mubr.f32.gmra.mrb[0].mxu0 %v1927
      %v2013 = vpop.f32.mrb[0].mxu0
      %v2014 = vadd.f32 0.0, %v2013
      %v2015 = vpop.f32.mrb[0].mxu0
      %v2016 = vadd.f32 0.0, %v2015
      %2017 = vdwg.mxu0
      %v2018 = vadd.f32 %v1904, %v1996
      %v2019 = vadd.f32 %v1905, %v1998
      %v2020 = vadd.f32 %v1906, %v2002
      %v2021 = vadd.f32 %v1907, %v2004
      %v2022 = vadd.f32 %v1908, %v2008
      %v2023 = vadd.f32 %v1909, %v2010
      %v2024 = vadd.f32 %v1910, %v2014
      %v2025 = vadd.f32 %v1911, %v2016
      %2026 = vrot.lane.b32.xlu0 %v1439, 127
      %v2027 = vpop.permute.xlu0 %2026
      %2028 = vrot.lane.b32.xlu0 %v1440, 127
      %v2029 = vpop.permute.xlu0 %2028
      %v2030 = vsel %vm1035, %v2027, %v2029
      %v2031 = vsel %vm1035, %v2029, %v2027
      %v2032 = vmul.f32 %v2030, %v1044
      %v2033 = vmul.f32 %v2031, %v1048
      %s2034 = scalar_lea.vmem %s7, 160
      %v2035 = vld [vmem:[%s2034] sm:$0xff]
      %v2036 = vld [vmem:[%s2034 + $0x8] sm:$0xff]
      %v2037 = vld [vmem:[%s2034 + $0x10] sm:$0xff]
      %v2038 = vld [vmem:[%s2034 + $0x18] sm:$0xff]
      %v2040 = vsel %vm604, %v2035, 0
      %v2043 = vsel %vm604, %v2036, 0
      %v2046 = vsel %vm604, %v2037, 0
      %v2049 = vsel %vm604, %v2038, 0
      %2051 = vmatprep.subr.mxu0 %v2033
      %2052 = vmatpush1.msra.mxu0 %v2032
      %2053 = vmatprep.subr.mxu0 0.0
      %2054 = vmatpush1.msra.mxu0 0.0
      %2055 = vmatprep.subr.mxu0 0.0
      %2056 = vmatpush1.msra.mxu0 0.0
      %2057 = vmatprep.subr.mxu0 0.0
      %2058 = vmatpush1.msra.mxu0 0.0
      %2059 = vmatprep.subr.mxu0 0.0
      %2060 = vmatpush1.msra.mxu0 0.0
      %2061 = vmatprep.subr.mxu0 0.0
      %2062 = vmatpush1.msra.mxu0 0.0
      %2063 = vmatprep.subr.mxu0 0.0
      %2064 = vmatpush1.msra.mxu0 0.0
      %2065 = vmatprep.subr.mxu0 0.0
      %2066 = vmatpush1.msra.mxu0 0.0
      %2067 = vmatprep.subr.mxu0 0.0
      %2068 = vmatpush1.msra.mxu0 0.0
      %2069 = vmatprep.subr.mxu0 0.0
      %2070 = vmatpush1.msra.mxu0 0.0
      %2071 = vmatprep.subr.mxu0 0.0
      %2072 = vmatpush1.msra.mxu0 0.0
      %2073 = vmatprep.subr.mxu0 0.0
      %2074 = vmatpush1.msra.mxu0 0.0
      %2075 = vmatprep.subr.mxu0 0.0
      %2076 = vmatpush1.msra.mxu0 0.0
      %2077 = vmatprep.subr.mxu0 0.0
      %2078 = vmatpush1.msra.mxu0 0.0
      %2079 = vmatprep.subr.mxu0 0.0
      %2080 = vmatpush1.msra.mxu0 0.0
      %2081 = vmatprep.subr.mxu0 0.0
      %2082 = vmatpush1.msra.mxu0 0.0
      %2083 = vmatprep.subr.mxu0 0.0
      %2084 = vmatpush1.msra.mxu0 0.0
      %2085 = vmatprep.subr.mxu0 0.0
      %2086 = vmatpush1.msra.mxu0 0.0
      %2087 = vmatprep.subr.mxu0 0.0
      %2088 = vmatpush1.msra.mxu0 0.0
      %2089 = vmatprep.subr.mxu0 0.0
      %2090 = vmatpush1.msra.mxu0 0.0
      %2091 = vmatprep.subr.mxu0 0.0
      %2092 = vmatpush1.msra.mxu0 0.0
      %2093 = vmatprep.subr.mxu0 0.0
      %2094 = vmatpush1.msra.mxu0 0.0
      %2095 = vmatprep.subr.mxu0 0.0
      %2096 = vmatpush1.msra.mxu0 0.0
      %2097 = vmatprep.subr.mxu0 0.0
      %2098 = vmatpush1.msra.mxu0 0.0
      %2099 = vmatprep.subr.mxu0 0.0
      %2100 = vmatpush1.msra.mxu0 0.0
      %2101 = vmatprep.subr.mxu0 0.0
      %2102 = vmatpush1.msra.mxu0 0.0
      %2103 = vmatprep.subr.mxu0 0.0
      %2104 = vmatpush1.msra.mxu0 0.0
      %2105 = vmatprep.subr.mxu0 0.0
      %2106 = vmatpush1.msra.mxu0 0.0
      %2107 = vmatprep.subr.mxu0 0.0
      %2108 = vmatpush1.msra.mxu0 0.0
      %2109 = vmatprep.subr.mxu0 0.0
      %2110 = vmatpush1.msra.mxu0 0.0
      %2111 = vmatprep.subr.mxu0 0.0
      %2112 = vmatpush1.msra.mxu0 0.0
      %2113 = vmatprep.subr.mxu0 0.0
      %2114 = vmatpush1.msra.mxu0 0.0
      %2115 = vmatprep.mubr.f32.mxu0 0.0
      %2116 = vmatmul.mubr.f32.gmra.mrb[0].mxu0 %v2040
      %v2117 = vpop.f32.mrb[0].mxu0
      %v2118 = vadd.f32 0.0, %v2117
      %v2119 = vpop.f32.mrb[0].mxu0
      %v2120 = vadd.f32 0.0, %v2119
      %2121 = vmatprep.mubr.f32.mxu0 0.0
      %2122 = vmatmul.mubr.f32.gmra.mrb[0].mxu0 %v2043
      %v2123 = vpop.f32.mrb[0].mxu0
      %v2124 = vadd.f32 0.0, %v2123
      %v2125 = vpop.f32.mrb[0].mxu0
      %v2126 = vadd.f32 0.0, %v2125
      %2127 = vmatprep.mubr.f32.mxu0 0.0
      %2128 = vmatmul.mubr.f32.gmra.mrb[0].mxu0 %v2046
      %v2129 = vpop.f32.mrb[0].mxu0
      %v2130 = vadd.f32 0.0, %v2129
      %v2131 = vpop.f32.mrb[0].mxu0
      %v2132 = vadd.f32 0.0, %v2131
      %2133 = vmatprep.mubr.f32.mxu0 0.0
      %2134 = vmatmul.mubr.f32.gmra.mrb[0].mxu0 %v2049
      %v2135 = vpop.f32.mrb[0].mxu0
      %v2136 = vadd.f32 0.0, %v2135
      %v2137 = vpop.f32.mrb[0].mxu0
      %v2138 = vadd.f32 0.0, %v2137
      %2139 = vdwg.mxu0
      %v2140 = vadd.f32 %v2018, %v2118
      %v2141 = vadd.f32 %v2019, %v2120
      %v2142 = vadd.f32 %v2020, %v2124
      %v2143 = vadd.f32 %v2021, %v2126
      %v2144 = vadd.f32 %v2022, %v2130
      %v2145 = vadd.f32 %v2023, %v2132
      %v2146 = vadd.f32 %v2024, %v2136
      %v2147 = vadd.f32 %v2025, %v2138
      %2148 = vrot.lane.b32.xlu0 %v1439, 113
      %v2149 = vpop.permute.xlu0 %2148
      %2150 = vrot.lane.b32.xlu0 %v1440, 113
      %v2151 = vpop.permute.xlu0 %2150
      %v2152 = vsel %vm1135, %v2149, %v2151
      %v2153 = vsel %vm1135, %v2151, %v2149
      %v2154 = vmul.f32 %v2152, %v1144
      %v2155 = vmul.f32 %v2153, %v1148
      %s2156 = scalar_lea.vmem %s7, 192
      %v2157 = vld [vmem:[%s2156] sm:$0xff]
      %v2158 = vld [vmem:[%s2156 + $0x8] sm:$0xff]
      %v2159 = vld [vmem:[%s2156 + $0x10] sm:$0xff]
      %v2160 = vld [vmem:[%s2156 + $0x18] sm:$0xff]
      %v2162 = vsel %vm604, %v2157, 0
      %v2165 = vsel %vm604, %v2158, 0
      %v2168 = vsel %vm604, %v2159, 0
      %v2171 = vsel %vm604, %v2160, 0
      %2173 = vmatprep.subr.mxu0 %v2155
      %2174 = vmatpush1.msra.mxu0 %v2154
      %2175 = vmatprep.subr.mxu0 0.0
      %2176 = vmatpush1.msra.mxu0 0.0
      %2177 = vmatprep.subr.mxu0 0.0
      %2178 = vmatpush1.msra.mxu0 0.0
      %2179 = vmatprep.subr.mxu0 0.0
      %2180 = vmatpush1.msra.mxu0 0.0
      %2181 = vmatprep.subr.mxu0 0.0
      %2182 = vmatpush1.msra.mxu0 0.0
      %2183 = vmatprep.subr.mxu0 0.0
      %2184 = vmatpush1.msra.mxu0 0.0
      %2185 = vmatprep.subr.mxu0 0.0
      %2186 = vmatpush1.msra.mxu0 0.0
      %2187 = vmatprep.subr.mxu0 0.0
      %2188 = vmatpush1.msra.mxu0 0.0
      %2189 = vmatprep.subr.mxu0 0.0
      %2190 = vmatpush1.msra.mxu0 0.0
      %2191 = vmatprep.subr.mxu0 0.0
      %2192 = vmatpush1.msra.mxu0 0.0
      %2193 = vmatprep.subr.mxu0 0.0
      %2194 = vmatpush1.msra.mxu0 0.0
      %2195 = vmatprep.subr.mxu0 0.0
      %2196 = vmatpush1.msra.mxu0 0.0
      %2197 = vmatprep.subr.mxu0 0.0
      %2198 = vmatpush1.msra.mxu0 0.0
      %2199 = vmatprep.subr.mxu0 0.0
      %2200 = vmatpush1.msra.mxu0 0.0
      %2201 = vmatprep.subr.mxu0 0.0
      %2202 = vmatpush1.msra.mxu0 0.0
      %2203 = vmatprep.subr.mxu0 0.0
      %2204 = vmatpush1.msra.mxu0 0.0
      %2205 = vmatprep.subr.mxu0 0.0
      %2206 = vmatpush1.msra.mxu0 0.0
      %2207 = vmatprep.subr.mxu0 0.0
      %2208 = vmatpush1.msra.mxu0 0.0
      %2209 = vmatprep.subr.mxu0 0.0
      %2210 = vmatpush1.msra.mxu0 0.0
      %2211 = vmatprep.subr.mxu0 0.0
      %2212 = vmatpush1.msra.mxu0 0.0
      %2213 = vmatprep.subr.mxu0 0.0
      %2214 = vmatpush1.msra.mxu0 0.0
      %2215 = vmatprep.subr.mxu0 0.0
      %2216 = vmatpush1.msra.mxu0 0.0
      %2217 = vmatprep.subr.mxu0 0.0
      %2218 = vmatpush1.msra.mxu0 0.0
      %2219 = vmatprep.subr.mxu0 0.0
      %2220 = vmatpush1.msra.mxu0 0.0
      %2221 = vmatprep.subr.mxu0 0.0
      %2222 = vmatpush1.msra.mxu0 0.0
      %2223 = vmatprep.subr.mxu0 0.0
      %2224 = vmatpush1.msra.mxu0 0.0
      %2225 = vmatprep.subr.mxu0 0.0
      %2226 = vmatpush1.msra.mxu0 0.0
      %2227 = vmatprep.subr.mxu0 0.0
      %2228 = vmatpush1.msra.mxu0 0.0
      %2229 = vmatprep.subr.mxu0 0.0
      %2230 = vmatpush1.msra.mxu0 0.0
      %2231 = vmatprep.subr.mxu0 0.0
      %2232 = vmatpush1.msra.mxu0 0.0
      %2233 = vmatprep.subr.mxu0 0.0
      %2234 = vmatpush1.msra.mxu0 0.0
      %2235 = vmatprep.subr.mxu0 0.0
      %2236 = vmatpush1.msra.mxu0 0.0
      %2237 = vmatprep.mubr.f32.mxu0 0.0
      %2238 = vmatmul.mubr.f32.gmra.mrb[0].mxu0 %v2162
      %v2239 = vpop.f32.mrb[0].mxu0
      %v2240 = vadd.f32 0.0, %v2239
      %v2241 = vpop.f32.mrb[0].mxu0
      %v2242 = vadd.f32 0.0, %v2241
      %2243 = vmatprep.mubr.f32.mxu0 0.0
      %2244 = vmatmul.mubr.f32.gmra.mrb[0].mxu0 %v2165
      %v2245 = vpop.f32.mrb[0].mxu0
      %v2246 = vadd.f32 0.0, %v2245
      %v2247 = vpop.f32.mrb[0].mxu0
      %v2248 = vadd.f32 0.0, %v2247
      %2249 = vmatprep.mubr.f32.mxu0 0.0
      %2250 = vmatmul.mubr.f32.gmra.mrb[0].mxu0 %v2168
      %v2251 = vpop.f32.mrb[0].mxu0
      %v2252 = vadd.f32 0.0, %v2251
      %v2253 = vpop.f32.mrb[0].mxu0
      %v2254 = vadd.f32 0.0, %v2253
      %2255 = vmatprep.mubr.f32.mxu0 0.0
      %2256 = vmatmul.mubr.f32.gmra.mrb[0].mxu0 %v2171
      %v2257 = vpop.f32.mrb[0].mxu0
      %v2258 = vadd.f32 0.0, %v2257
      %v2259 = vpop.f32.mrb[0].mxu0
      %v2260 = vadd.f32 0.0, %v2259
      %2261 = vdwg.mxu0
      %v2262 = vadd.f32 %v2140, %v2240
      %v2263 = vadd.f32 %v2141, %v2242
      %v2264 = vadd.f32 %v2142, %v2246
      %v2265 = vadd.f32 %v2143, %v2248
      %v2266 = vadd.f32 %v2144, %v2252
      %v2267 = vadd.f32 %v2145, %v2254
      %v2268 = vadd.f32 %v2146, %v2258
      %v2269 = vadd.f32 %v2147, %v2260
      %2270 = vrot.lane.b32.xlu0 %v1439, 112
      %v2271 = vpop.permute.xlu0 %2270
      %2272 = vrot.lane.b32.xlu0 %v1440, 112
      %v2273 = vpop.permute.xlu0 %2272
      %v2274 = vsel %vm1235, %v2271, %v2273
      %v2275 = vsel %vm1235, %v2273, %v2271
      %v2276 = vmul.f32 %v2274, %v1244
      %v2277 = vmul.f32 %v2275, %v1248
      %s2278 = scalar_lea.vmem %s7, 224
      %v2279 = vld [vmem:[%s2278] sm:$0xff]
      %v2280 = vld [vmem:[%s2278 + $0x8] sm:$0xff]
      %v2281 = vld [vmem:[%s2278 + $0x10] sm:$0xff]
      %v2282 = vld [vmem:[%s2278 + $0x18] sm:$0xff]
      %v2284 = vsel %vm604, %v2279, 0
      %v2287 = vsel %vm604, %v2280, 0
      %v2290 = vsel %vm604, %v2281, 0
      %v2293 = vsel %vm604, %v2282, 0
      %2295 = vmatprep.subr.mxu0 %v2277
      %2296 = vmatpush1.msra.mxu0 %v2276
      %2297 = vmatprep.subr.mxu0 0.0
      %2298 = vmatpush1.msra.mxu0 0.0
      %2299 = vmatprep.subr.mxu0 0.0
      %2300 = vmatpush1.msra.mxu0 0.0
      %2301 = vmatprep.subr.mxu0 0.0
      %2302 = vmatpush1.msra.mxu0 0.0
      %2303 = vmatprep.subr.mxu0 0.0
      %2304 = vmatpush1.msra.mxu0 0.0
      %2305 = vmatprep.subr.mxu0 0.0
      %2306 = vmatpush1.msra.mxu0 0.0
      %2307 = vmatprep.subr.mxu0 0.0
      %2308 = vmatpush1.msra.mxu0 0.0
      %2309 = vmatprep.subr.mxu0 0.0
      %2310 = vmatpush1.msra.mxu0 0.0
      %2311 = vmatprep.subr.mxu0 0.0
      %2312 = vmatpush1.msra.mxu0 0.0
      %2313 = vmatprep.subr.mxu0 0.0
      %2314 = vmatpush1.msra.mxu0 0.0
      %2315 = vmatprep.subr.mxu0 0.0
      %2316 = vmatpush1.msra.mxu0 0.0
      %2317 = vmatprep.subr.mxu0 0.0
      %2318 = vmatpush1.msra.mxu0 0.0
      %2319 = vmatprep.subr.mxu0 0.0
      %2320 = vmatpush1.msra.mxu0 0.0
      %2321 = vmatprep.subr.mxu0 0.0
      %2322 = vmatpush1.msra.mxu0 0.0
      %2323 = vmatprep.subr.mxu0 0.0
      %2324 = vmatpush1.msra.mxu0 0.0
      %2325 = vmatprep.subr.mxu0 0.0
      %2326 = vmatpush1.msra.mxu0 0.0
      %2327 = vmatprep.subr.mxu0 0.0
      %2328 = vmatpush1.msra.mxu0 0.0
      %2329 = vmatprep.subr.mxu0 0.0
      %2330 = vmatpush1.msra.mxu0 0.0
      %2331 = vmatprep.subr.mxu0 0.0
      %2332 = vmatpush1.msra.mxu0 0.0
      %2333 = vmatprep.subr.mxu0 0.0
      %2334 = vmatpush1.msra.mxu0 0.0
      %2335 = vmatprep.subr.mxu0 0.0
      %2336 = vmatpush1.msra.mxu0 0.0
      %2337 = vmatprep.subr.mxu0 0.0
      %2338 = vmatpush1.msra.mxu0 0.0
      %2339 = vmatprep.subr.mxu0 0.0
      %2340 = vmatpush1.msra.mxu0 0.0
      %2341 = vmatprep.subr.mxu0 0.0
      %2342 = vmatpush1.msra.mxu0 0.0
      %2343 = vmatprep.subr.mxu0 0.0
      %2344 = vmatpush1.msra.mxu0 0.0
      %2345 = vmatprep.subr.mxu0 0.0
      %2346 = vmatpush1.msra.mxu0 0.0
      %2347 = vmatprep.subr.mxu0 0.0
      %2348 = vmatpush1.msra.mxu0 0.0
      %2349 = vmatprep.subr.mxu0 0.0
      %2350 = vmatpush1.msra.mxu0 0.0
      %2351 = vmatprep.subr.mxu0 0.0
      %2352 = vmatpush1.msra.mxu0 0.0
      %2353 = vmatprep.subr.mxu0 0.0
      %2354 = vmatpush1.msra.mxu0 0.0
      %2355 = vmatprep.subr.mxu0 0.0
      %2356 = vmatpush1.msra.mxu0 0.0
      %2357 = vmatprep.subr.mxu0 0.0
      %2358 = vmatpush1.msra.mxu0 0.0
      %2359 = vmatprep.mubr.f32.mxu0 0.0
      %2360 = vmatmul.mubr.f32.gmra.mrb[0].mxu0 %v2284
      %v2361 = vpop.f32.mrb[0].mxu0
      %v2362 = vadd.f32 0.0, %v2361
      %v2363 = vpop.f32.mrb[0].mxu0
      %v2364 = vadd.f32 0.0, %v2363
      %2365 = vmatprep.mubr.f32.mxu0 0.0
      %2366 = vmatmul.mubr.f32.gmra.mrb[0].mxu0 %v2287
      %v2367 = vpop.f32.mrb[0].mxu0
      %v2368 = vadd.f32 0.0, %v2367
      %v2369 = vpop.f32.mrb[0].mxu0
      %v2370 = vadd.f32 0.0, %v2369
      %2371 = vmatprep.mubr.f32.mxu0 0.0
      %2372 = vmatmul.mubr.f32.gmra.mrb[0].mxu0 %v2290
      %v2373 = vpop.f32.mrb[0].mxu0
      %v2374 = vadd.f32 0.0, %v2373
      %v2375 = vpop.f32.mrb[0].mxu0
      %v2376 = vadd.f32 0.0, %v2375
      %2377 = vmatprep.mubr.f32.mxu0 0.0
      %2378 = vmatmul.mubr.f32.gmra.mrb[0].mxu0 %v2293
      %v2379 = vpop.f32.mrb[0].mxu0
      %v2380 = vadd.f32 0.0, %v2379
      %v2381 = vpop.f32.mrb[0].mxu0
      %v2382 = vadd.f32 0.0, %v2381
      %2383 = vdwg.mxu0
      %v2384 = vadd.f32 %v2262, %v2362
      %v2385 = vadd.f32 %v2263, %v2364
      %v2386 = vadd.f32 %v2264, %v2368
      %v2387 = vadd.f32 %v2265, %v2370
      %v2388 = vadd.f32 %v2266, %v2374
      %v2389 = vadd.f32 %v2267, %v2376
      %v2390 = vadd.f32 %v2268, %v2380
      %v2391 = vadd.f32 %v2269, %v2382
      %2392 = vrot.lane.b32.xlu0 %v1439, 111
      %v2393 = vpop.permute.xlu0 %2392
      %2394 = vrot.lane.b32.xlu0 %v1440, 111
      %v2395 = vpop.permute.xlu0 %2394
      %v2396 = vsel %vm1335, %v2393, %v2395
      %v2397 = vsel %vm1335, %v2395, %v2393
      %v2398 = vmul.f32 %v2396, %v1344
      %v2399 = vmul.f32 %v2397, %v1348
      %s2400 = scalar_lea.vmem %s7, 256
      %v2401 = vld [vmem:[%s2400] sm:$0xff]
      %v2402 = vld [vmem:[%s2400 + $0x8] sm:$0xff]
      %v2403 = vld [vmem:[%s2400 + $0x10] sm:$0xff]
      %v2404 = vld [vmem:[%s2400 + $0x18] sm:$0xff]
      %v2406 = vsel %vm604, %v2401, 0
      %v2409 = vsel %vm604, %v2402, 0
      %v2412 = vsel %vm604, %v2403, 0
      %v2415 = vsel %vm604, %v2404, 0
      %2417 = vmatprep.subr.mxu0 %v2399
      %2418 = vmatpush1.msra.mxu0 %v2398
      %2419 = vmatprep.subr.mxu0 0.0
      %2420 = vmatpush1.msra.mxu0 0.0
      %2421 = vmatprep.subr.mxu0 0.0
      %2422 = vmatpush1.msra.mxu0 0.0
      %2423 = vmatprep.subr.mxu0 0.0
      %2424 = vmatpush1.msra.mxu0 0.0
      %2425 = vmatprep.subr.mxu0 0.0
      %2426 = vmatpush1.msra.mxu0 0.0
      %2427 = vmatprep.subr.mxu0 0.0
      %2428 = vmatpush1.msra.mxu0 0.0
      %2429 = vmatprep.subr.mxu0 0.0
      %2430 = vmatpush1.msra.mxu0 0.0
      %2431 = vmatprep.subr.mxu0 0.0
      %2432 = vmatpush1.msra.mxu0 0.0
      %2433 = vmatprep.subr.mxu0 0.0
      %2434 = vmatpush1.msra.mxu0 0.0
      %2435 = vmatprep.subr.mxu0 0.0
      %2436 = vmatpush1.msra.mxu0 0.0
      %2437 = vmatprep.subr.mxu0 0.0
      %2438 = vmatpush1.msra.mxu0 0.0
      %2439 = vmatprep.subr.mxu0 0.0
      %2440 = vmatpush1.msra.mxu0 0.0
      %2441 = vmatprep.subr.mxu0 0.0
      %2442 = vmatpush1.msra.mxu0 0.0
      %2443 = vmatprep.subr.mxu0 0.0
      %2444 = vmatpush1.msra.mxu0 0.0
      %2445 = vmatprep.subr.mxu0 0.0
      %2446 = vmatpush1.msra.mxu0 0.0
      %2447 = vmatprep.subr.mxu0 0.0
      %2448 = vmatpush1.msra.mxu0 0.0
      %2449 = vmatprep.subr.mxu0 0.0
      %2450 = vmatpush1.msra.mxu0 0.0
      %2451 = vmatprep.subr.mxu0 0.0
      %2452 = vmatpush1.msra.mxu0 0.0
      %2453 = vmatprep.subr.mxu0 0.0
      %2454 = vmatpush1.msra.mxu0 0.0
      %2455 = vmatprep.subr.mxu0 0.0
      %2456 = vmatpush1.msra.mxu0 0.0
      %2457 = vmatprep.subr.mxu0 0.0
      %2458 = vmatpush1.msra.mxu0 0.0
      %2459 = vmatprep.subr.mxu0 0.0
      %2460 = vmatpush1.msra.mxu0 0.0
      %2461 = vmatprep.subr.mxu0 0.0
      %2462 = vmatpush1.msra.mxu0 0.0
      %2463 = vmatprep.subr.mxu0 0.0
      %2464 = vmatpush1.msra.mxu0 0.0
      %2465 = vmatprep.subr.mxu0 0.0
      %2466 = vmatpush1.msra.mxu0 0.0
      %2467 = vmatprep.subr.mxu0 0.0
      %2468 = vmatpush1.msra.mxu0 0.0
      %2469 = vmatprep.subr.mxu0 0.0
      %2470 = vmatpush1.msra.mxu0 0.0
      %2471 = vmatprep.subr.mxu0 0.0
      %2472 = vmatpush1.msra.mxu0 0.0
      %2473 = vmatprep.subr.mxu0 0.0
      %2474 = vmatpush1.msra.mxu0 0.0
      %2475 = vmatprep.subr.mxu0 0.0
      %2476 = vmatpush1.msra.mxu0 0.0
      %2477 = vmatprep.subr.mxu0 0.0
      %2478 = vmatpush1.msra.mxu0 0.0
      %2479 = vmatprep.subr.mxu0 0.0
      %2480 = vmatpush1.msra.mxu0 0.0
      %2481 = vmatprep.mubr.f32.mxu0 0.0
      %2482 = vmatmul.mubr.f32.gmra.mrb[0].mxu0 %v2406
      %v2483 = vpop.f32.mrb[0].mxu0
      %v2484 = vadd.f32 0.0, %v2483
      %v2485 = vpop.f32.mrb[0].mxu0
      %v2486 = vadd.f32 0.0, %v2485
      %2487 = vmatprep.mubr.f32.mxu0 0.0
      %2488 = vmatmul.mubr.f32.gmra.mrb[0].mxu0 %v2409
      %v2489 = vpop.f32.mrb[0].mxu0
      %v2490 = vadd.f32 0.0, %v2489
      %v2491 = vpop.f32.mrb[0].mxu0
      %v2492 = vadd.f32 0.0, %v2491
      %2493 = vmatprep.mubr.f32.mxu0 0.0
      %2494 = vmatmul.mubr.f32.gmra.mrb[0].mxu0 %v2412
      %v2495 = vpop.f32.mrb[0].mxu0
      %v2496 = vadd.f32 0.0, %v2495
      %v2497 = vpop.f32.mrb[0].mxu0
      %v2498 = vadd.f32 0.0, %v2497
      %2499 = vmatprep.mubr.f32.mxu0 0.0
      %2500 = vmatmul.mubr.f32.gmra.mrb[0].mxu0 %v2415
      %v2501 = vpop.f32.mrb[0].mxu0
      %v2502 = vadd.f32 0.0, %v2501
      %v2503 = vpop.f32.mrb[0].mxu0
      %v2504 = vadd.f32 0.0, %v2503
      %2505 = vdwg.mxu0
      %v2506 = vadd.f32 %v2384, %v2484
      %v2507 = vadd.f32 %v2385, %v2486
      %v2508 = vadd.f32 %v2386, %v2490
      %v2509 = vadd.f32 %v2387, %v2492
      %v2510 = vadd.f32 %v2388, %v2496
      %v2511 = vadd.f32 %v2389, %v2498
      %v2512 = vadd.f32 %v2390, %v2502
      %v2513 = vadd.f32 %v2391, %v2504
      %v2514 = vld [vmem:[%s8] sm:$0xff]
      %v2515 = vld [vmem:[%s8 + $0x8] sm:$0xff]
      %v2516 = vld [vmem:[%s8 + $0x10] sm:$0xff]
      %v2517 = vld [vmem:[%s8 + $0x18] sm:$0xff]
      %2519 = vset.pattern.permute.xlu0 0
      %2520 = vperm.xlu0 %2519, %v2514
      %v2521 = vpop.permute.xlu0 %2520
      %2524 = vset.pattern.permute.xlu0 0
      %2525 = vperm.xlu0 %2524, %v2515
      %v2526 = vpop.permute.xlu0 %2525
      %2529 = vset.pattern.permute.xlu0 0
      %2530 = vperm.xlu0 %2529, %v2516
      %v2531 = vpop.permute.xlu0 %2530
      %2534 = vset.pattern.permute.xlu0 0
      %2535 = vperm.xlu0 %2534, %v2517
      %v2536 = vpop.permute.xlu0 %2535
      %v2538 = vadd.f32 %v2506, %v2521
      %v2539 = vadd.f32 %v2507, %v2521
      %v2540 = vadd.f32 %v2508, %v2526
      %v2541 = vadd.f32 %v2509, %v2526
      %v2542 = vadd.f32 %v2510, %v2531
      %v2543 = vadd.f32 %v2511, %v2531
      %v2544 = vadd.f32 %v2512, %v2536
      %v2545 = vadd.f32 %v2513, %v2536
      %2546 = vst [vmem:[%s379] sm:$0xff] %v2538
      %2547 = vst [vmem:[%s379 + $0x8] sm:$0xff] %v2539
      %2548 = vst [vmem:[%s379 + $0x10] sm:$0xff] %v2540
      %2549 = vst [vmem:[%s379 + $0x18] sm:$0xff] %v2541
      %2550 = vst [vmem:[%s379 + $0x20] sm:$0xff] %v2542
      %2551 = vst [vmem:[%s379 + $0x28] sm:$0xff] %v2543
      %2552 = vst [vmem:[%s379 + $0x30] sm:$0xff] %v2544
      %2553 = vst [vmem:[%s379 + $0x38] sm:$0xff] %v2545
      %p2554 = scmp.lt.s32.totalorder %s21, 1
      %s2555 = scalar_select %p2554, %s21, 1
      %s2556 = smul.addr %s2555, 8
      %s2557 = smul.addr %s2556, 8
      %s2558 = scalar_lea.vmem %s10, %s2557
      // Predicated region
      $region61: #{upsample_forward.1} parent=59 // pred_check
        %p2559 = pneg %p259
      $region62: #{upsample_forward.1} parent=59 // pred_check_branch
        %2561 = sbr.rel (%p2559) target = $region64
      $region63: #{upsample_forward.1} parent=59 // pred_region
        _
      $region64: #{upsample_forward.1} parent=59 // pred_fallthru
        _
    $region60: #{upsample_forward.1} parent=5 // pred_fallthru
      _
    %p2562 = scmp.le.s32.totalorder 2, %s16
    // Predicated region
    $region65: #{upsample_forward.1} parent=5 // pred_check
      %p2563 = pneg %p2562
    $region66: #{upsample_forward.1} parent=5 // pred_check_branch
      %2565 = sbr.rel (%p2563) target = $region68
    $region67: #{upsample_forward.1} parent=5 // pred_region
      %s2566 = ssub.s32 %s16, 2
      // Predicated region
      $region69: #{upsample_forward.1} parent=67 // pred_check
        %p2567 = pneg %p265
      $region70: #{upsample_forward.1} parent=67 // pred_check_branch
        %2569 = sbr.rel (%p2567) target = $region72
      $region71: #{upsample_forward.1} parent=67 // pred_region
        %p2570 = scmp.lt.s32.totalorder %s22, 1
        %s2571 = scalar_select %p2570, %s22, 1
        %s2572 = smul.addr %s2571, 8
        %s2573 = smul.addr %s2572, 8
        %s2574 = scalar_lea.vmem %s10, %s2573
      $region72: #{upsample_forward.1} parent=67 // pred_fallthru
        _
    $region68: #{upsample_forward.1} parent=5 // pred_fallthru
      _
  $region6: #{upsample_forward.1} parent=0 // loop_footer
    %s20 = sadd.s32 1, %s16
  $region7: #{upsample_forward.1} parent=0 // loop_footer_branch
    %15 = sbr.rel target = $region3
  $region8: #{upsample_forward.1} parent=0 // loop_exit
    _

</llo_original>
